<compile_context>
chip_gen: v6e
topology: v6e:2x2x1
jax: 0.10.0
libtpu: 0.0.40
codegen_flags: <defaults>
</compile_context>

<pallas_src>
import math

import jax
import jax.numpy as jnp
from jax import lax
from jax.experimental import pallas as pl
from jax.experimental.pallas import tpu as pltpu


def _round_up(a, b):
    return ((a + b - 1) // b) * b


def _make_nonlocal_kernel(Cqp, n_valid, n_pad, mxu_dtype):
    """Flash-style nonlocal-attention kernel, fully channel-major."""
    mask_keys = (n_pad != n_valid)
    neg_inf = float("-inf")

    def kernel(xq_ref, xk_ref, wq_ref, bq_ref, wvk_ref, bvk_ref, gamma_ref,
               o_ref, q_s, m_s, l_s, acc_s):
        # Block shapes (channel-major; spatial positions on the lane axis):
        #   xq_ref : (1, C, tq)     xk_ref : (1, C, tk)
        #   wq_ref : (Cqp, C)       bq_ref : (Cqp, 1)
        #   wvk_ref: (Cqp+C, C)     bvk_ref: (Cqp+C, 1)   (key rows first)
        #   o_ref  : (1, C, tq)
        # Scratch: q_s (Cqp, tq) mxu_dtype; m_s/l_s (1, tq) f32; acc_s (C, tq) f32
        ki = pl.program_id(2)
        tk = xk_ref.shape[-1]

        @pl.when(ki == 0)
        def _init():
            xq = xq_ref[0].astype(mxu_dtype)                         # (C, tq)
            q = lax.dot_general(                                     # Wq @ x_q
                wq_ref[...], xq,
                dimension_numbers=(((1,), (0,)), ((), ())),
                preferred_element_type=jnp.float32) + bq_ref[...]    # (Cqp, tq)
            q_s[...] = q.astype(mxu_dtype)
            m_s[...] = jnp.full_like(m_s, neg_inf)
            l_s[...] = jnp.zeros_like(l_s)
            acc_s[...] = jnp.zeros_like(acc_s)

        # Fused key+value projection of the KV tile: one MXU pass, channel-major.
        xk = xk_ref[0].astype(mxu_dtype)                             # (C, tk)
        vk = lax.dot_general(
            wvk_ref[...], xk,
            dimension_numbers=(((1,), (0,)), ((), ())),
            preferred_element_type=jnp.float32) + bvk_ref[...]       # (Cqp+C, tk)
        k_c = vk[:Cqp, :]                                            # (Cqp, tk)
        v_c = vk[Cqp:, :]                                            # (C,   tk)

        # Transposed score tile: s_t[j, i] = <k_j, q_i> (contract channel axis
        # of both channel-major operands -> no data relayout needed).
        s_t = lax.dot_general(
            k_c.astype(mxu_dtype), q_s[...],
            dimension_numbers=(((0,), (0,)), ((), ())),
            preferred_element_type=jnp.float32)                      # (tk, tq)

        if mask_keys:
            col = ki * tk + lax.broadcasted_iota(jnp.int32, (tk, 1), 0)
            s_t = jnp.where(col < n_valid, s_t, neg_inf)

        # Online (flash) softmax over the KV axis: sublane reductions, (1, tq)
        # running stats that broadcast cleanly over the (C, tq) accumulator.
        m_prev = m_s[...]
        m_new = jnp.maximum(m_prev, jnp.max(s_t, axis=0, keepdims=True))
        alpha = jnp.exp(m_prev - m_new)                              # (1, tq)
        p_t = jnp.exp(s_t - m_new)                                   # (tk, tq)
        l_s[...] = alpha * l_s[...] + jnp.sum(p_t, axis=0, keepdims=True)
        acc_s[...] = alpha * acc_s[...] + lax.dot_general(
            v_c.astype(mxu_dtype), p_t.astype(mxu_dtype),
            dimension_numbers=(((1,), (0,)), ((), ())),
            preferred_element_type=jnp.float32)                      # (C, tq)
        m_s[...] = m_new

        @pl.when(ki == pl.num_programs(2) - 1)
        def _finalize():
            inv_l = 1.0 / l_s[...]                                   # exact
            out = acc_s[...] * inv_l                                 # (C, tq)
            # Lane-dense (C, tq) store, fused residual; zero relayout.
            o_ref[0] = (gamma_ref[0] * out + xq_ref[0]).astype(o_ref.dtype)

    return kernel


def nonlocal_block(x_nchw, wq, bq, wk, bk, wv, bv, gamma, *,
                   tq=256, tk=1024, mxu_dtype=jnp.bfloat16,
                   vmem_limit_bytes=None):
    """x_nchw: (B, C, W, H) float32. Returns (B, C, W, H) float32."""
    B, C, W, H = x_nchw.shape
    N = W * H
    Cq = wq.shape[0]
    Cqp = _round_up(max(Cq, 1), 8)          # pad query/key channels to 8 rows

    # Tile sizes: multiples of 128, clamped to the (128-rounded) sequence.
    n128 = _round_up(N, 128)
    tq = min(_round_up(tq, 128), n128)
    tk = min(_round_up(tk, 128), n128)
    n_pad = _round_up(N, math.lcm(tq, tk))  # pad + mask instead of tq=tk=N fallback

    f32 = jnp.float32
    # x stays f32 in HBM (exact residual); MXU operands are cast per-tile.
    x_ccn = x_nchw.reshape(B, C, N).astype(f32)
    if n_pad != N:
        x_ccn = jnp.pad(x_ccn, ((0, 0), (0, 0), (0, n_pad - N)))

    # Zero-pad Cq -> Cqp and fuse key+value projections (key rows first so both
    # the (Cqp, tk) key slice and the (C, tk) value slice are sublane-aligned).
    wq_p = jnp.zeros((Cqp, C), f32).at[:Cq].set(wq.astype(f32)).astype(mxu_dtype)
    bq_p = jnp.zeros((Cqp, 1), f32).at[:Cq, 0].set(bq.astype(f32))
    wk_p = jnp.zeros((Cqp, C), f32).at[:Cq].set(wk.astype(f32))
    bk_p = jnp.zeros((Cqp,), f32).at[:Cq].set(bk.astype(f32))
    wvk = jnp.concatenate([wk_p, wv.astype(f32)], axis=0).astype(mxu_dtype)
    bvk = jnp.concatenate([bk_p, bv.astype(f32)], axis=0).reshape(Cqp + C, 1)
    gamma_arr = jnp.asarray(gamma, f32).reshape(1)

    # Explicit scoped-VMEM budget: 2x (double-buffered) x/out tiles + weights,
    # resident scratch, and the per-step vk / score / p temporaries.
    mxu_bytes = jnp.dtype(mxu_dtype).itemsize
    est = (2 * 4 * (2 * C * tq + C * tk)
           + 2 * mxu_bytes * (2 * Cqp + C) * C
           + mxu_bytes * Cqp * tq + 4 * (2 + C) * tq
           + 4 * (Cqp + C) * tk + 3 * 4 * tk * tq)
    if vmem_limit_bytes is None:
        # Cap at 48 MiB so the same config stays within v7x's 64 MiB VMEM.
        vmem_limit_bytes = int(min(max(2 * est, 32 << 20), 48 << 20))

    kernel = _make_nonlocal_kernel(Cqp, N, n_pad, mxu_dtype)
    const = lambda shape: pl.BlockSpec(shape, lambda b, qi, ki: (0, 0))

    # TODO(synk): for very large N one could keep a projected KV slab resident
    # per batch (inner pl.loop) to avoid re-projecting KV once per query tile;
    # with tq=256 the redundant work is ~10% so the simple grid form is kept.
    out_ccn = pl.pallas_call(
        kernel,
        out_shape=jax.ShapeDtypeStruct((B, C, n_pad), f32),
        grid_spec=pltpu.PrefetchScalarGridSpec(
            num_scalar_prefetch=0,
            grid=(B, n_pad // tq, n_pad // tk),
            in_specs=[
                pl.BlockSpec((1, C, tq), lambda b, qi, ki: (b, 0, qi)),  # x (q tile)
                pl.BlockSpec((1, C, tk), lambda b, qi, ki: (b, 0, ki)),  # x (kv tile)
                const((Cqp, C)),                                          # Wq (padded)
                const((Cqp, 1)),                                          # bq
                const((Cqp + C, C)),                                      # W_vk fused
                const((Cqp + C, 1)),                                      # b_vk fused
                pl.BlockSpec(memory_space=pltpu.MemorySpace.SMEM),        # gamma
            ],
            out_specs=pl.BlockSpec((1, C, tq), lambda b, qi, ki: (b, 0, qi)),
            scratch_shapes=[
                pltpu.VMEM((Cqp, tq), mxu_dtype),   # q tile (channel-major)
                pltpu.VMEM((1, tq), f32),           # running max
                pltpu.VMEM((1, tq), f32),           # running sum
                pltpu.VMEM((C, tq), f32),           # output accumulator
            ],
        ),
        compiler_params=pltpu.CompilerParams(
            dimension_semantics=("parallel", "parallel", "arbitrary"),
            vmem_limit_bytes=vmem_limit_bytes),
    )(x_ccn, x_ccn, wq_p, bq_p, wvk, bvk, gamma_arr)

    return out_ccn[:, :, :N].reshape(B, C, W, H)


def nonlocal_block_ref(x, wq, bq, wk, bk, wv, bv, gamma):
    """Pure-JAX reference mirroring the PyTorch forward exactly."""
    B, C, W, H = x.shape
    N = W * H

    def conv1x1(x, w, b):  # (B,C,W,H) @ (Co,C) -> (B,Co,W,H)
        return jnp.einsum('bchw,oc->bohw', x, w) + b[None, :, None, None]

    q = conv1x1(x, wq, bq).reshape(B, -1, N).transpose(0, 2, 1)   # (B, N, Cq)
    k = conv1x1(x, wk, bk).reshape(B, -1, N)                      # (B, Cq, N)
    energy = jnp.einsum('bnc,bcm->bnm', q, k)                     # (B, N, N)
    att = jax.nn.softmax(energy, axis=-1)
    v = conv1x1(x, wv, bv).reshape(B, -1, N)                      # (B, C, N)
    out = jnp.einsum('bcn,bmn->bcm', v, att).reshape(B, C, W, H)
    return gamma * out + x


if __name__ == "__main__":
    # in_dim=32 -> query/key channels = 4 (padded to 8); W=H=16 -> N=256.
    B, C, W, H = 2, 32, 16, 16
    Cq = C // 8

    key = jax.random.PRNGKey(0)
    kx, kq, kbq, kk, kbk, kv, kbv, kx2 = jax.random.split(key, 8)

    x = jax.random.normal(kx, (B, C, W, H), jnp.float32)
    wq = jax.random.normal(kq, (Cq, C), jnp.float32) * 0.1
    bq = jax.random.normal(kbq, (Cq,), jnp.float32) * 0.1
    wk = jax.random.normal(kk, (Cq, C), jnp.float32) * 0.1
    bk = jax.random.normal(kbk, (Cq,), jnp.float32) * 0.1
    wv = jax.random.normal(kv, (C, C), jnp.float32) * 0.1
    bv = jax.random.normal(kbv, (C,), jnp.float32) * 0.1
    # PyTorch __init__ sets gamma = 0 (residual-only); use a nonzero value so
    # the attention path is actually exercised in the numerical check.
    gamma = jnp.float32(0.5)

    y_ref = nonlocal_block_ref(x, wq, bq, wk, bk, wv, bv, gamma)

    # 1) Default config: bf16 MXU operands, f32 accumulation & softmax stats.
    y_bf16 = jax.block_until_ready(
        nonlocal_block(x, wq, bq, wk, bk, wv, bv, gamma))
    assert y_bf16.shape == (B, C, W, H)
    assert jnp.allclose(y_bf16, y_ref, rtol=2e-2, atol=2e-2), "bf16 mismatch"

    # 2) Full-f32 MXU path: tight tolerance vs the exact reference.
    y_f32 = jax.block_until_ready(
        nonlocal_block(x, wq, bq, wk, bk, wv, bv, gamma,
                       mxu_dtype=jnp.float32))
    assert jnp.allclose(y_f32, y_ref, rtol=1e-3, atol=1e-3), "f32 mismatch"

    # 3) Non-multiple-of-128 spatial size (N=144): exercises the pad + key-mask
    #    path and the multi-tile flash accumulation (grid (B, 2, 2), tq=tk=128).
    W2 = H2 = 12
    x2 = jax.random.normal(kx2, (B, C, W2, H2), jnp.float32)
    y2 = jax.block_until_ready(
        nonlocal_block(x2, wq, bq, wk, bk, wv, bv, gamma,
                       tq=128, tk=128, mxu_dtype=jnp.float32))
    y2_ref = nonlocal_block_ref(x2, wq, bq, wk, bk, wv, bv, gamma)
    assert jnp.allclose(y2, y2_ref, rtol=1e-3, atol=1e-3), "masked/tiled mismatch"

    print("KERNEL_OK")
</pallas_src>

<mosaic_0001>
module attributes {stable_mosaic.version = 11 : i64} {
  func.func @kernel(%arg0: i32, %arg1: i32, %arg2: i32, %arg3: memref<1x32x256xf32, #tpu.memory_space<vmem>>, %arg4: memref<1x32x256xf32, #tpu.memory_space<vmem>>, %arg5: memref<8x32xbf16, #tpu.memory_space<vmem>>, %arg6: memref<8x1xf32, #tpu.memory_space<vmem>>, %arg7: memref<40x32xbf16, #tpu.memory_space<vmem>>, %arg8: memref<40x1xf32, #tpu.memory_space<vmem>>, %arg9: memref<1xf32, #tpu.memory_space<smem>>, %arg10: memref<1x32x256xf32, #tpu.memory_space<vmem>>, %arg11: memref<8x256xbf16, #tpu.memory_space<vmem>>, %arg12: memref<1x256xf32, #tpu.memory_space<vmem>>, %arg13: memref<1x256xf32, #tpu.memory_space<vmem>>, %arg14: memref<32x256xf32, #tpu.memory_space<vmem>>) attributes {dimension_semantics = [#tpu.dimension_semantics<parallel>, #tpu.dimension_semantics<parallel>, #tpu.dimension_semantics<arbitrary>], iteration_bounds = array<i64: 2, 1, 1>, scalar_prefetch = 0 : i64, scratch_operands = 4 : i64, tpu.core_type = #tpu.core_type<tc>, window_params = [{transform_indices = @transform_0, window_bounds = array<i64: 1, 32, 256>}, {transform_indices = @transform_1, window_bounds = array<i64: 1, 32, 256>}, {pipeline_mode = #tpu.pipeline_mode<synchronous>, transform_indices = @transform_2, window_bounds = array<i64: 8, 32>}, {pipeline_mode = #tpu.pipeline_mode<synchronous>, transform_indices = @transform_3, window_bounds = array<i64: 8, 1>}, {pipeline_mode = #tpu.pipeline_mode<synchronous>, transform_indices = @transform_4, window_bounds = array<i64: 40, 32>}, {pipeline_mode = #tpu.pipeline_mode<synchronous>, transform_indices = @transform_5, window_bounds = array<i64: 40, 1>}, {transform_indices = @transform_6, window_bounds = array<i64: 1>}, {transform_indices = @transform_7, window_bounds = array<i64: 1, 32, 256>}]} {
    %c0_i32 = arith.constant 0 : i32
    %0 = arith.cmpi eq, %arg2, %c0_i32 : i32
    %1 = arith.extui %0 : i1 to i32
    %c0_i32_0 = arith.constant 0 : i32
    %2 = arith.cmpi ne, %1, %c0_i32_0 : i32
    scf.if %2 {
      %c0_27 = arith.constant 0 : index
      %c0_28 = arith.constant 0 : index
      %c0_29 = arith.constant 0 : index
      %43 = vector.load %arg3[%c0_27, %c0_28, %c0_29] : memref<1x32x256xf32, #tpu.memory_space<vmem>>, vector<1x32x256xf32>
      %44 = vector.shape_cast %43 : vector<1x32x256xf32> to vector<32x256xf32>
      %45 = arith.truncf %44 : vector<32x256xf32> to vector<32x256xbf16>
      %c0_30 = arith.constant 0 : index
      %c0_31 = arith.constant 0 : index
      %46 = vector.load %arg5[%c0_30, %c0_31] : memref<8x32xbf16, #tpu.memory_space<vmem>>, vector<8x32xbf16>
      %cst_32 = arith.constant dense<0.000000e+00> : vector<8x256xf32>
      %47 = tpu.matmul %46, %45, %cst_32 {dimension_numbers = #tpu.dot_dimension_numbers<[1], [0], [0], [1], [0, 0, 1, 1], [], []>} : vector<8x32xbf16>, vector<32x256xbf16>, vector<8x256xf32> -> vector<8x256xf32>
      %c0_33 = arith.constant 0 : index
      %c0_34 = arith.constant 0 : index
      %48 = vector.load %arg6[%c0_33, %c0_34] : memref<8x1xf32, #tpu.memory_space<vmem>>, vector<8x1xf32>
      %49 = vector.broadcast %48 : vector<8x1xf32> to vector<8x256xf32>
      %50 = arith.addf %47, %49 : vector<8x256xf32>
      %51 = arith.truncf %50 : vector<8x256xf32> to vector<8x256xbf16>
      %c0_35 = arith.constant 0 : index
      %c0_36 = arith.constant 0 : index
      %52 = vector.load %arg11[%c0_35, %c0_36] : memref<8x256xbf16, #tpu.memory_space<vmem>>, vector<8x256xbf16>
      tpu.vector_store %arg11[%c0_35, %c0_36], %51 {strides = array<i32>} : memref<8x256xbf16, #tpu.memory_space<vmem>>, vector<8x256xbf16>,
      %cst_37 = arith.constant 0xFF800000 : f32
      %53 = vector.broadcast %cst_37 : f32 to vector<1x256xf32>
      %c0_38 = arith.constant 0 : index
      %c0_39 = arith.constant 0 : index
      %54 = vector.load %arg12[%c0_38, %c0_39] : memref<1x256xf32, #tpu.memory_space<vmem>>, vector<1x256xf32>
      tpu.vector_store %arg12[%c0_38, %c0_39], %53 {strides = array<i32>} : memref<1x256xf32, #tpu.memory_space<vmem>>, vector<1x256xf32>,
      %cst_40 = arith.constant 0.000000e+00 : f32
      %55 = vector.broadcast %cst_40 : f32 to vector<1x256xf32>
      %c0_41 = arith.constant 0 : index
      %c0_42 = arith.constant 0 : index
      %56 = vector.load %arg13[%c0_41, %c0_42] : memref<1x256xf32, #tpu.memory_space<vmem>>, vector<1x256xf32>
      tpu.vector_store %arg13[%c0_41, %c0_42], %55 {strides = array<i32>} : memref<1x256xf32, #tpu.memory_space<vmem>>, vector<1x256xf32>,
      %cst_43 = arith.constant 0.000000e+00 : f32
      %57 = vector.broadcast %cst_43 : f32 to vector<32x256xf32>
      %c0_44 = arith.constant 0 : index
      %c0_45 = arith.constant 0 : index
      %58 = vector.load %arg14[%c0_44, %c0_45] : memref<32x256xf32, #tpu.memory_space<vmem>>, vector<32x256xf32>
      tpu.vector_store %arg14[%c0_44, %c0_45], %57 {strides = array<i32>} : memref<32x256xf32, #tpu.memory_space<vmem>>, vector<32x256xf32>,
    } else {
    }
    %c0 = arith.constant 0 : index
    %c0_1 = arith.constant 0 : index
    %c0_2 = arith.constant 0 : index
    %3 = vector.load %arg4[%c0, %c0_1, %c0_2] : memref<1x32x256xf32, #tpu.memory_space<vmem>>, vector<1x32x256xf32>
    %4 = vector.shape_cast %3 : vector<1x32x256xf32> to vector<32x256xf32>
    %5 = arith.truncf %4 : vector<32x256xf32> to vector<32x256xbf16>
    %c0_3 = arith.constant 0 : index
    %c0_4 = arith.constant 0 : index
    %6 = vector.load %arg7[%c0_3, %c0_4] : memref<40x32xbf16, #tpu.memory_space<vmem>>, vector<40x32xbf16>
    %cst = arith.constant dense<0.000000e+00> : vector<40x256xf32>
    %7 = tpu.matmul %6, %5, %cst {dimension_numbers = #tpu.dot_dimension_numbers<[1], [0], [0], [1], [0, 0, 1, 1], [], []>} : vector<40x32xbf16>, vector<32x256xbf16>, vector<40x256xf32> -> vector<40x256xf32>
    %c0_5 = arith.constant 0 : index
    %c0_6 = arith.constant 0 : index
    %8 = vector.load %arg8[%c0_5, %c0_6] : memref<40x1xf32, #tpu.memory_space<vmem>>, vector<40x1xf32>
    %9 = vector.broadcast %8 : vector<40x1xf32> to vector<40x256xf32>
    %10 = arith.addf %7, %9 : vector<40x256xf32>
    %11 = vector.extract_strided_slice %10 {offsets = [0, 0], sizes = [8, 256], strides = [1, 1]} : vector<40x256xf32> to vector<8x256xf32>
    %12 = vector.extract_strided_slice %10 {offsets = [8, 0], sizes = [32, 256], strides = [1, 1]} : vector<40x256xf32> to vector<32x256xf32>
    %13 = arith.truncf %11 : vector<8x256xf32> to vector<8x256xbf16>
    %c0_7 = arith.constant 0 : index
    %c0_8 = arith.constant 0 : index
    %14 = vector.load %arg11[%c0_7, %c0_8] : memref<8x256xbf16, #tpu.memory_space<vmem>>, vector<8x256xbf16>
    %cst_9 = arith.constant dense<0.000000e+00> : vector<256x256xf32>
    %15 = tpu.matmul %13, %14, %cst_9 {dimension_numbers = #tpu.dot_dimension_numbers<[0], [0], [1], [1], [0, 1, 1, 1], [], []>} : vector<8x256xbf16>, vector<8x256xbf16>, vector<256x256xf32> -> vector<256x256xf32>
    %c0_10 = arith.constant 0 : index
    %c0_11 = arith.constant 0 : index
    %16 = vector.load %arg12[%c0_10, %c0_11] : memref<1x256xf32, #tpu.memory_space<vmem>>, vector<1x256xf32>
    %cst_12 = arith.constant dense<0xFF800000> : vector<256xf32>
    %17 = vector.multi_reduction <maximumf>, %15, %cst_12 [0] : vector<256x256xf32> to vector<256xf32>
    %18 = vector.shape_cast %17 : vector<256xf32> to vector<1x256xf32>
    %19 = arith.maximumf %16, %18 : vector<1x256xf32>
    %20 = arith.subf %16, %19 : vector<1x256xf32>
    %21 = math.exp %20 : vector<1x256xf32>
    %22 = vector.broadcast %19 : vector<1x256xf32> to vector<256x256xf32>
    %23 = arith.subf %15, %22 : vector<256x256xf32>
    %24 = math.exp %23 : vector<256x256xf32>
    %c0_13 = arith.constant 0 : index
    %c0_14 = arith.constant 0 : index
    %25 = vector.load %arg13[%c0_13, %c0_14] : memref<1x256xf32, #tpu.memory_space<vmem>>, vector<1x256xf32>
    %26 = arith.mulf %21, %25 : vector<1x256xf32>
    %cst_15 = arith.constant dense<0.000000e+00> : vector<256xf32>
    %27 = vector.multi_reduction <add>, %24, %cst_15 [0] : vector<256x256xf32> to vector<256xf32>
    %28 = vector.shape_cast %27 : vector<256xf32> to vector<1x256xf32>
    %29 = arith.addf %26, %28 : vector<1x256xf32>
    %c0_16 = arith.constant 0 : index
    %c0_17 = arith.constant 0 : index
    %30 = vector.load %arg13[%c0_16, %c0_17] : memref<1x256xf32, #tpu.memory_space<vmem>>, vector<1x256xf32>
    tpu.vector_store %arg13[%c0_16, %c0_17], %29 {strides = array<i32>} : memref<1x256xf32, #tpu.memory_space<vmem>>, vector<1x256xf32>,
    %c0_18 = arith.constant 0 : index
    %c0_19 = arith.constant 0 : index
    %31 = vector.load %arg14[%c0_18, %c0_19] : memref<32x256xf32, #tpu.memory_space<vmem>>, vector<32x256xf32>
    %32 = vector.broadcast %21 : vector<1x256xf32> to vector<32x256xf32>
    %33 = arith.mulf %32, %31 : vector<32x256xf32>
    %34 = arith.truncf %12 : vector<32x256xf32> to vector<32x256xbf16>
    %35 = arith.truncf %24 : vector<256x256xf32> to vector<256x256xbf16>
    %cst_20 = arith.constant dense<0.000000e+00> : vector<32x256xf32>
    %36 = tpu.matmul %34, %35, %cst_20 {dimension_numbers = #tpu.dot_dimension_numbers<[1], [0], [0], [1], [0, 0, 1, 1], [], []>} : vector<32x256xbf16>, vector<256x256xbf16>, vector<32x256xf32> -> vector<32x256xf32>
    %37 = arith.addf %33, %36 : vector<32x256xf32>
    %c0_21 = arith.constant 0 : index
    %c0_22 = arith.constant 0 : index
    %38 = vector.load %arg14[%c0_21, %c0_22] : memref<32x256xf32, #tpu.memory_space<vmem>>, vector<32x256xf32>
    tpu.vector_store %arg14[%c0_21, %c0_22], %37 {strides = array<i32>} : memref<32x256xf32, #tpu.memory_space<vmem>>, vector<32x256xf32>,
    %c0_23 = arith.constant 0 : index
    %c0_24 = arith.constant 0 : index
    %39 = vector.load %arg12[%c0_23, %c0_24] : memref<1x256xf32, #tpu.memory_space<vmem>>, vector<1x256xf32>
    tpu.vector_store %arg12[%c0_23, %c0_24], %19 {strides = array<i32>} : memref<1x256xf32, #tpu.memory_space<vmem>>, vector<1x256xf32>,
    %c0_i32_25 = arith.constant 0 : i32
    %40 = arith.cmpi eq, %arg2, %c0_i32_25 : i32
    %41 = arith.extui %40 : i1 to i32
    %c0_i32_26 = arith.constant 0 : i32
    %42 = arith.cmpi ne, %41, %c0_i32_26 : i32
    scf.if %42 {
      %c0_27 = arith.constant 0 : index
      %c0_28 = arith.constant 0 : index
      %43 = vector.load %arg13[%c0_27, %c0_28] : memref<1x256xf32, #tpu.memory_space<vmem>>, vector<1x256xf32>
      %cst_29 = arith.constant 1.000000e+00 : f32
      %44 = vector.broadcast %cst_29 : f32 to vector<1x256xf32>
      %45 = arith.divf %44, %43 : vector<1x256xf32>
      %c0_30 = arith.constant 0 : index
      %c0_31 = arith.constant 0 : index
      %46 = vector.load %arg14[%c0_30, %c0_31] : memref<32x256xf32, #tpu.memory_space<vmem>>, vector<32x256xf32>
      %47 = vector.broadcast %45 : vector<1x256xf32> to vector<32x256xf32>
      %48 = arith.mulf %46, %47 : vector<32x256xf32>
      %c0_32 = arith.constant 0 : index
      %49 = memref.load %arg9[%c0_32] : memref<1xf32, #tpu.memory_space<smem>>
      %50 = vector.broadcast %49 : f32 to vector<32x256xf32>
      %51 = arith.mulf %50, %48 : vector<32x256xf32>
      %c0_33 = arith.constant 0 : index
      %c0_34 = arith.constant 0 : index
      %c0_35 = arith.constant 0 : index
      %52 = vector.load %arg3[%c0_33, %c0_34, %c0_35] : memref<1x32x256xf32, #tpu.memory_space<vmem>>, vector<1x32x256xf32>
      %53 = vector.shape_cast %52 : vector<1x32x256xf32> to vector<32x256xf32>
      %54 = arith.addf %51, %53 : vector<32x256xf32>
      %c0_36 = arith.constant 0 : index
      %c0_37 = arith.constant 0 : index
      %c0_38 = arith.constant 0 : index
      %55 = vector.load %arg10[%c0_36, %c0_37, %c0_38] : memref<1x32x256xf32, #tpu.memory_space<vmem>>, vector<1x32x256xf32>
      %56 = vector.shape_cast %55 : vector<1x32x256xf32> to vector<32x256xf32>
      %57 = vector.shape_cast %54 : vector<32x256xf32> to vector<1x32x256xf32>
      tpu.vector_store %arg10[%c0_36, %c0_37, %c0_38], %57 {strides = array<i32>} : memref<1x32x256xf32, #tpu.memory_space<vmem>>, vector<1x32x256xf32>,
    } else {
    }
    return
  }
  func.func @transform_0(%arg0: i32, %arg1: i32, %arg2: i32) -> (i32, i32, i32) {
    %c0_i32 = arith.constant 0 : i32
    %c0_i32_0 = arith.constant 0 : i32
    return %arg0, %c0_i32, %arg1 : i32, i32, i32
  }
  func.func @transform_1(%arg0: i32, %arg1: i32, %arg2: i32) -> (i32, i32, i32) {
    %c0_i32 = arith.constant 0 : i32
    %c0_i32_0 = arith.constant 0 : i32
    return %arg0, %c0_i32, %arg2 : i32, i32, i32
  }
  func.func @transform_2(%arg0: i32, %arg1: i32, %arg2: i32) -> (i32, i32) {
    %c0_i32 = arith.constant 0 : i32
    %c0_i32_0 = arith.constant 0 : i32
    %c0_i32_1 = arith.constant 0 : i32
    return %c0_i32, %c0_i32_0 : i32, i32
  }
  func.func @transform_3(%arg0: i32, %arg1: i32, %arg2: i32) -> (i32, i32) {
    %c0_i32 = arith.constant 0 : i32
    %c0_i32_0 = arith.constant 0 : i32
    %c0_i32_1 = arith.constant 0 : i32
    return %c0_i32, %c0_i32_0 : i32, i32
  }
  func.func @transform_4(%arg0: i32, %arg1: i32, %arg2: i32) -> (i32, i32) {
    %c0_i32 = arith.constant 0 : i32
    %c0_i32_0 = arith.constant 0 : i32
    %c0_i32_1 = arith.constant 0 : i32
    return %c0_i32, %c0_i32_0 : i32, i32
  }
  func.func @transform_5(%arg0: i32, %arg1: i32, %arg2: i32) -> (i32, i32) {
    %c0_i32 = arith.constant 0 : i32
    %c0_i32_0 = arith.constant 0 : i32
    %c0_i32_1 = arith.constant 0 : i32
    return %c0_i32, %c0_i32_0 : i32, i32
  }
  func.func @transform_6(%arg0: i32, %arg1: i32, %arg2: i32) -> i32 {
    %c0_i32 = arith.constant 0 : i32
    %c0_i32_0 = arith.constant 0 : i32
    return %c0_i32 : i32
  }
  func.func @transform_7(%arg0: i32, %arg1: i32, %arg2: i32) -> (i32, i32, i32) {
    %c0_i32 = arith.constant 0 : i32
    %c0_i32_0 = arith.constant 0 : i32
    return %arg0, %c0_i32, %arg1 : i32, i32, i32
  }
}

</mosaic_0001>

<llo_original>
// kernel: tpu_custom_call.1
$region0: #{tpu_custom_call.1}
  #allocation0 [shape = 'u32[]', space=smem, size = 0x4, offset = 0x4, fixed_abs, tag = 'smem constant byte address 0x4 - core index']
  #allocation1 [shape = 'u32[144,128]{1,0:T(1,128)}', space=vmem, size = 0x12000, scoped, tag = 'internal scratch']
  #allocation2 [shape = 'bf16[8,256]{1,0:T(8,128)(2,1)}', space=vmem, size = 0x1000, scoped, tag = 'scratch operand']
  #allocation3 [shape = 'f32[1,256]{1,0:T(1,128)}', space=vmem, size = 0x400, scoped, tag = 'scratch operand']
  #allocation4 [shape = 'f32[1,256]{1,0:T(1,128)}', space=vmem, size = 0x400, scoped, tag = 'scratch operand']
  #allocation5 [shape = 'f32[32,256]{1,0:T(8,128)}', space=vmem, size = 0x8000, scoped, tag = 'scratch operand']
  #allocation6 [shape = 'f32[1]{0:T(128)S(6)}', space=smem, size = 0x200, scoped, tag = 'scoped memory for tpu_custom_call.1']
  %s0 = inlined_call_operand.hbm [shape: f32[2,32,256], index: 0, kind: input, shape index: {}]
  %s1 = inlined_call_operand.hbm [shape: f32[2,32,256], index: 1, kind: input, shape index: {}]
  %s2 = inlined_call_operand.vmem [shape: bf16[8,32], index: 2, kind: input, shape index: {}]
  %s3 = inlined_call_operand.vmem [shape: f32[8,1], index: 3, kind: input, shape index: {}]
  %s4 = inlined_call_operand.vmem [shape: bf16[40,32], index: 4, kind: input, shape index: {}]
  %s5 = inlined_call_operand.vmem [shape: f32[40,1], index: 5, kind: input, shape index: {}]
  %s6 = inlined_call_operand.<no memory space> [shape: f32[1], index: 6, kind: input, shape index: {}]
  %s7 = inlined_call_operand.hbm [shape: f32[2,32,256], index: 7, kind: output, shape index: {}]
  %s8 = sld [smem:[#allocation0]]
  $region77: #{tpu_custom_call.1} parent=0
    _
  %s10 = ssub.s32 1, %s8
  %s11 = scalar_select 0, %s10, %s8
  %12 = sst [smem:[#allocation6]] %s6
  $region1: #{tpu_custom_call.1} parent=0
    #allocation7 [shape = 'u8[65536]{0}', space=vmem, size = 0x10000, scoped, tag = 'input window, operand 0']
    #allocation8 [shape = 's32[2]{0}', space=sflag, size = 0x8, scoped, tag = 'scoped memory for tpu_custom_call.1']
    #allocation9 [shape = 's32[2]{0}', space=sflag, size = 0x8, scoped, tag = 'scoped memory for tpu_custom_call.1']
    #allocation10 [shape = 'u8[65536]{0}', space=vmem, size = 0x10000, scoped, tag = 'input window, operand 1']
    #allocation11 [shape = 's32[2]{0}', space=sflag, size = 0x8, scoped, tag = 'scoped memory for tpu_custom_call.1']
    #allocation12 [shape = 'u8[65536]{0}', space=vmem, size = 0x10000, scoped, tag = 'output window, operand 0']
    %13 = vsyncpa [#allocation8], 0
    %s14 = scalar_lea.sflag [#allocation8], 1
    %15 = vsyncpa %s14, 0
    %16 = vsyncpa [#allocation11], 0
    %s17 = scalar_lea.sflag [#allocation11], 1
    %18 = vsyncpa %s17, 0
    %19 = vsyncpa [#allocation9], 0
    %s20 = scalar_lea.sflag [#allocation9], 1
    %21 = vsyncpa %s20, 0
    loop: start=0, step=1, limit=4
    $region2: #{tpu_custom_call.1} parent=1 // loop_pre_header
      _
    $region3: #{tpu_custom_call.1} parent=1 // loop_header
      %s23 = sphi 0, %s27
      %p24 = scmp.ge.s32.totalorder %s23, 4
      %s30 = sphi 0, %s49
      %s31 = sphi 0, %s45
      %s32 = sphi 0, %s41
      %s33 = sphi 0, %s30
      %s34 = sphi 0, %s31
      %s35 = sphi 0, %s32
      %s36 = sphi 0, %s33
      %s37 = sphi 0, %s34
      %s38 = sphi 0, %s35
      %s54 = sphi 0, %s56
      %s57 = sphi 0, %s54
      %s58 = sphi 0, %s57
      %s74 = sphi 0, %s58
      %s82 = sphi 0, %s84
      %s85 = sphi 0, %s82
      %s86 = sphi 0, %s85
      %s102 = sphi 0, %s86
      %s106 = sphi 0, %s106
      %s108 = sphi 0, %s106
      %s109 = sphi 0, %s108
      %s123 = sphi 0, %s109
      %s127 = sphi 0, %s127
      %s129 = sphi 0, %s127
      %s130 = sphi 0, %s129
      %s144 = sphi 0, %s130
      %s148 = sphi 0, %s148
      %s150 = sphi 0, %s148
      %s151 = sphi 0, %s150
      %s165 = sphi 0, %s151
      %s169 = sphi 0, %s169
      %s171 = sphi 0, %s169
      %s172 = sphi 0, %s171
      %s186 = sphi 0, %s172
      %s190 = sphi 0, %s190
      %s192 = sphi 0, %s190
      %s193 = sphi 0, %s192
      %s207 = sphi 0, %s193
      %s215 = sphi 0, %s217
      %s218 = sphi 0, %s215
      %s219 = sphi 0, %s218
      %s235 = sphi 0, %s219
    $region4: #{tpu_custom_call.1} parent=1 // loop_header_branch
      %26 = sbr.rel (%p24) target = $region8
    $region5: #{tpu_custom_call.1} parent=1 // loop_body
      %s28 = ssub.s32 %s23, 1
      %s29 = ssub.s32 %s23, 2
      %s39 = sadd.s32 1, %s32
      %p40 = scmp.ge.s32.totalorder %s39, 1
      %s41 = scalar_select %p40, 0, %s39
      %s42 = sadd.s32 1, %s31
      %s43 = scalar_select %p40, %s42, %s31
      %p44 = scmp.ge.s32.totalorder %s43, 1
      %s45 = scalar_select %p44, 0, %s43
      %s46 = sadd.s32 1, %s30
      %s47 = scalar_select %p44, %s46, %s30
      %p48 = scmp.ge.s32.totalorder %s47, 2
      %s49 = scalar_select %p48, 0, %s47
      %s50 = ssub.s32 %s30, %s49
      %s51 = ssub.s32 %s31, %s45
      %s52 = sor.u32 %s50, %s51
      %p53 = scmp.eq.s32.totalorder %s52, 0
      %s55 = sadd.s32 %s54, 1
      %s56 = scalar_select %p53, %s54, %s55
      %p59 = pneg %p53
      %p60 = scmp.eq.s32.totalorder %s23, 1
      %p61 = por %p59, %p60
      %p62 = scmp.ne.s32.totalorder %s54, %s57
      %p63 = scmp.eq.s32.totalorder %s23, 0
      %p64 = por %p62, %p63
      %p65 = scmp.ne.s32.totalorder %s54, %s57
      %p66 = scmp.eq.s32.totalorder %s28, 1
      %p67 = por %p65, %p66
      %p68 = scmp.ne.s32.totalorder %s57, %s58
      %p69 = scmp.eq.s32.totalorder %s28, 0
      %p70 = por %p68, %p69
      %p71 = scmp.ne.s32.totalorder %s57, %s58
      %p72 = scmp.eq.s32.totalorder %s29, 1
      %p73 = por %p71, %p72
      %p75 = scmp.ne.s32.totalorder %s58, %s74
      %p76 = scmp.eq.s32.totalorder %s29, 0
      %p77 = por %p75, %p76
      %s78 = ssub.s32 %s30, %s49
      %s79 = ssub.s32 %s32, %s41
      %s80 = sor.u32 %s78, %s79
      %p81 = scmp.eq.s32.totalorder %s80, 0
      %s83 = sadd.s32 %s82, 1
      %s84 = scalar_select %p81, %s82, %s83
      %p87 = pneg %p81
      %p88 = scmp.eq.s32.totalorder %s23, 1
      %p89 = por %p87, %p88
      %p90 = scmp.ne.s32.totalorder %s82, %s85
      %p91 = scmp.eq.s32.totalorder %s23, 0
      %p92 = por %p90, %p91
      %p93 = scmp.ne.s32.totalorder %s82, %s85
      %p94 = scmp.eq.s32.totalorder %s28, 1
      %p95 = por %p93, %p94
      %p96 = scmp.ne.s32.totalorder %s85, %s86
      %p97 = scmp.eq.s32.totalorder %s28, 0
      %p98 = por %p96, %p97
      %p99 = scmp.ne.s32.totalorder %s85, %s86
      %p100 = scmp.eq.s32.totalorder %s29, 1
      %p101 = por %p99, %p100
      %p103 = scmp.ne.s32.totalorder %s86, %s102
      %p104 = scmp.eq.s32.totalorder %s29, 0
      %p105 = por %p103, %p104
      %s107 = sadd.s32 %s106, 1
      %p110 = scmp.eq.s32.totalorder %s23, 1
      %p111 = scmp.ne.s32.totalorder %s106, %s108
      %p112 = scmp.eq.s32.totalorder %s23, 0
      %p113 = por %p111, %p112
      %p114 = scmp.ne.s32.totalorder %s106, %s108
      %p115 = scmp.eq.s32.totalorder %s28, 1
      %p116 = por %p114, %p115
      %p117 = scmp.ne.s32.totalorder %s108, %s109
      %p118 = scmp.eq.s32.totalorder %s28, 0
      %p119 = por %p117, %p118
      %p120 = scmp.ne.s32.totalorder %s108, %s109
      %p121 = scmp.eq.s32.totalorder %s29, 1
      %p122 = por %p120, %p121
      %p124 = scmp.ne.s32.totalorder %s109, %s123
      %p125 = scmp.eq.s32.totalorder %s29, 0
      %p126 = por %p124, %p125
      %s128 = sadd.s32 %s127, 1
      %p131 = scmp.eq.s32.totalorder %s23, 1
      %p132 = scmp.ne.s32.totalorder %s127, %s129
      %p133 = scmp.eq.s32.totalorder %s23, 0
      %p134 = por %p132, %p133
      %p135 = scmp.ne.s32.totalorder %s127, %s129
      %p136 = scmp.eq.s32.totalorder %s28, 1
      %p137 = por %p135, %p136
      %p138 = scmp.ne.s32.totalorder %s129, %s130
      %p139 = scmp.eq.s32.totalorder %s28, 0
      %p140 = por %p138, %p139
      %p141 = scmp.ne.s32.totalorder %s129, %s130
      %p142 = scmp.eq.s32.totalorder %s29, 1
      %p143 = por %p141, %p142
      %p145 = scmp.ne.s32.totalorder %s130, %s144
      %p146 = scmp.eq.s32.totalorder %s29, 0
      %p147 = por %p145, %p146
      %s149 = sadd.s32 %s148, 1
      %p152 = scmp.eq.s32.totalorder %s23, 1
      %p153 = scmp.ne.s32.totalorder %s148, %s150
      %p154 = scmp.eq.s32.totalorder %s23, 0
      %p155 = por %p153, %p154
      %p156 = scmp.ne.s32.totalorder %s148, %s150
      %p157 = scmp.eq.s32.totalorder %s28, 1
      %p158 = por %p156, %p157
      %p159 = scmp.ne.s32.totalorder %s150, %s151
      %p160 = scmp.eq.s32.totalorder %s28, 0
      %p161 = por %p159, %p160
      %p162 = scmp.ne.s32.totalorder %s150, %s151
      %p163 = scmp.eq.s32.totalorder %s29, 1
      %p164 = por %p162, %p163
      %p166 = scmp.ne.s32.totalorder %s151, %s165
      %p167 = scmp.eq.s32.totalorder %s29, 0
      %p168 = por %p166, %p167
      %s170 = sadd.s32 %s169, 1
      %p173 = scmp.eq.s32.totalorder %s23, 1
      %p174 = scmp.ne.s32.totalorder %s169, %s171
      %p175 = scmp.eq.s32.totalorder %s23, 0
      %p176 = por %p174, %p175
      %p177 = scmp.ne.s32.totalorder %s169, %s171
      %p178 = scmp.eq.s32.totalorder %s28, 1
      %p179 = por %p177, %p178
      %p180 = scmp.ne.s32.totalorder %s171, %s172
      %p181 = scmp.eq.s32.totalorder %s28, 0
      %p182 = por %p180, %p181
      %p183 = scmp.ne.s32.totalorder %s171, %s172
      %p184 = scmp.eq.s32.totalorder %s29, 1
      %p185 = por %p183, %p184
      %p187 = scmp.ne.s32.totalorder %s172, %s186
      %p188 = scmp.eq.s32.totalorder %s29, 0
      %p189 = por %p187, %p188
      %s191 = sadd.s32 %s190, 1
      %p194 = scmp.eq.s32.totalorder %s23, 1
      %p195 = scmp.ne.s32.totalorder %s190, %s192
      %p196 = scmp.eq.s32.totalorder %s23, 0
      %p197 = por %p195, %p196
      %p198 = scmp.ne.s32.totalorder %s190, %s192
      %p199 = scmp.eq.s32.totalorder %s28, 1
      %p200 = por %p198, %p199
      %p201 = scmp.ne.s32.totalorder %s192, %s193
      %p202 = scmp.eq.s32.totalorder %s28, 0
      %p203 = por %p201, %p202
      %p204 = scmp.ne.s32.totalorder %s192, %s193
      %p205 = scmp.eq.s32.totalorder %s29, 1
      %p206 = por %p204, %p205
      %p208 = scmp.ne.s32.totalorder %s193, %s207
      %p209 = scmp.eq.s32.totalorder %s29, 0
      %p210 = por %p208, %p209
      %s211 = ssub.s32 %s30, %s49
      %s212 = ssub.s32 %s31, %s45
      %s213 = sor.u32 %s211, %s212
      %p214 = scmp.eq.s32.totalorder %s213, 0
      %s216 = sadd.s32 %s215, 1
      %s217 = scalar_select %p214, %s215, %s216
      %p220 = pneg %p214
      %p221 = scmp.eq.s32.totalorder %s23, 1
      %p222 = por %p220, %p221
      %p223 = scmp.ne.s32.totalorder %s215, %s218
      %p224 = scmp.eq.s32.totalorder %s23, 0
      %p225 = por %p223, %p224
      %p226 = scmp.ne.s32.totalorder %s215, %s218
      %p227 = scmp.eq.s32.totalorder %s28, 1
      %p228 = por %p226, %p227
      %p229 = scmp.ne.s32.totalorder %s218, %s219
      %p230 = scmp.eq.s32.totalorder %s28, 0
      %p231 = por %p229, %p230
      %p232 = scmp.ne.s32.totalorder %s218, %s219
      %p233 = scmp.eq.s32.totalorder %s29, 1
      %p234 = por %p232, %p233
      %p236 = scmp.ne.s32.totalorder %s219, %s235
      %p237 = scmp.eq.s32.totalorder %s29, 0
      %p238 = por %p236, %p237
      %p239 = scmp.le.s32.totalorder 1, %s23
      %p240 = scmp.lt.s32.totalorder %s23, 3
      %p241 = pnand %p239, %p240
      %p242 = pneg %p241
      // Predicated region
      $region9: #{tpu_custom_call.1} parent=5 // pred_check
        _
      $region10: #{tpu_custom_call.1} parent=5 // pred_check_branch
        %244 = sbr.rel (%p241) target = $region12
      $region11: #{tpu_custom_call.1} parent=5 // pred_region
        %s245 = ssub.s32 %s23, 1
        // Predicated region
        $region13: #{tpu_custom_call.1} parent=11 // pred_check
          %p246 = pneg %p119
        $region14: #{tpu_custom_call.1} parent=11 // pred_check_branch
          %248 = sbr.rel (%p246) target = $region16
        $region15: #{tpu_custom_call.1} parent=11 // pred_region
          _
        $region16: #{tpu_custom_call.1} parent=11 // pred_fallthru
          _
        // Predicated region
        $region17: #{tpu_custom_call.1} parent=11 // pred_check
          %p249 = pneg %p140
        $region18: #{tpu_custom_call.1} parent=11 // pred_check_branch
          %251 = sbr.rel (%p249) target = $region20
        $region19: #{tpu_custom_call.1} parent=11 // pred_region
          _
        $region20: #{tpu_custom_call.1} parent=11 // pred_fallthru
          _
        // Predicated region
        $region21: #{tpu_custom_call.1} parent=11 // pred_check
          %p252 = pneg %p161
        $region22: #{tpu_custom_call.1} parent=11 // pred_check_branch
          %254 = sbr.rel (%p252) target = $region24
        $region23: #{tpu_custom_call.1} parent=11 // pred_region
          _
        $region24: #{tpu_custom_call.1} parent=11 // pred_fallthru
          _
        // Predicated region
        $region25: #{tpu_custom_call.1} parent=11 // pred_check
          %p255 = pneg %p182
        $region26: #{tpu_custom_call.1} parent=11 // pred_check_branch
          %257 = sbr.rel (%p255) target = $region28
        $region27: #{tpu_custom_call.1} parent=11 // pred_region
          _
        $region28: #{tpu_custom_call.1} parent=11 // pred_fallthru
          _
        // Predicated region
        $region29: #{tpu_custom_call.1} parent=11 // pred_check
          %p258 = pneg %p203
        $region30: #{tpu_custom_call.1} parent=11 // pred_check_branch
          %260 = sbr.rel (%p258) target = $region32
        $region31: #{tpu_custom_call.1} parent=11 // pred_region
          _
        $region32: #{tpu_custom_call.1} parent=11 // pred_fallthru
          _
      $region12: #{tpu_custom_call.1} parent=5 // pred_fallthru
        _
      %p261 = scmp.lt.s32.totalorder %s23, 2
      // Predicated region
      $region33: #{tpu_custom_call.1} parent=5 // pred_check
        %p262 = pneg %p261
      $region34: #{tpu_custom_call.1} parent=5 // pred_check_branch
        %264 = sbr.rel (%p262) target = $region36
      $region35: #{tpu_custom_call.1} parent=5 // pred_region
        // Predicated region
        $region37: #{tpu_custom_call.1} parent=35 // pred_check
          %p265 = pneg %p64
        $region38: #{tpu_custom_call.1} parent=35 // pred_check_branch
          %267 = sbr.rel (%p265) target = $region40
        $region39: #{tpu_custom_call.1} parent=35 // pred_region
          %s268 = sand.u32 %s54, 1
          %s269 = scalar_lea.sflag [#allocation8], %s268
          %s270 = sand.u32 %s54, 1
          %s271 = smul.addr %s270, 64
          %s272 = scalar_lea.vmem [#allocation7], %s271
          %s273 = smul.u32 2, %s31
          %s275 = ssub.s32 1024, 1024
          %276 = vsyncadd %s269, %s275
          %s277 = smul.addr %s30, 8
          %s278 = sadd.s32 %s273, %s277
          %s279 = smul.addr %s278, 128
          %s280 = scalar_lea.hbm %s0, %s279
          %s281 = sshll.u32 %s272, 4
          %s282 = int_to_ptr.vmem [resolvable:$true] %s281
          %287 = dma.hbm_to_vmem [thread:$0]  %s280, 1024, %s282, %s269, 256, 256, 16
        $region40: #{tpu_custom_call.1} parent=35 // pred_fallthru
          _
        // Predicated region
        $region41: #{tpu_custom_call.1} parent=35 // pred_check
          %p288 = pneg %p92
        $region42: #{tpu_custom_call.1} parent=35 // pred_check_branch
          %290 = sbr.rel (%p288) target = $region44
        $region43: #{tpu_custom_call.1} parent=35 // pred_region
          %s291 = sand.u32 %s82, 1
          %s292 = scalar_lea.sflag [#allocation11], %s291
          %s293 = sand.u32 %s82, 1
          %s294 = smul.addr %s293, 64
          %s295 = scalar_lea.vmem [#allocation10], %s294
          %s296 = smul.u32 2, %s32
          %s298 = ssub.s32 1024, 1024
          %299 = vsyncadd %s292, %s298
          %s300 = smul.addr %s30, 8
          %s301 = sadd.s32 %s296, %s300
          %s302 = smul.addr %s301, 128
          %s303 = scalar_lea.hbm %s1, %s302
          %s304 = sshll.u32 %s295, 4
          %s305 = int_to_ptr.vmem [resolvable:$true] %s304
          %310 = dma.hbm_to_vmem [thread:$0]  %s303, 1024, %s305, %s292, 256, 256, 16
        $region44: #{tpu_custom_call.1} parent=35 // pred_fallthru
          _
      $region36: #{tpu_custom_call.1} parent=5 // pred_fallthru
        _
      %p311 = scmp.le.s32.totalorder 1, %s23
      %p312 = scmp.lt.s32.totalorder %s23, 3
      %p313 = pnand %p311, %p312
      %p314 = pneg %p313
      // Predicated region
      $region45: #{tpu_custom_call.1} parent=5 // pred_check
        _
      $region46: #{tpu_custom_call.1} parent=5 // pred_check_branch
        %316 = sbr.rel (%p313) target = $region48
      $region47: #{tpu_custom_call.1} parent=5 // pred_region
        %s317 = ssub.s32 %s23, 1
        %s318 = sand.u32 %s57, 1
        %s319 = scalar_lea.sflag [#allocation8], %s318
        %s320 = sand.u32 %s57, 1
        %s321 = smul.addr %s320, 64
        %s322 = scalar_lea.vmem [#allocation7], %s321
        // Predicated region
        $region49: #{tpu_custom_call.1} parent=47 // pred_check
          %p323 = pneg %p70
        $region50: #{tpu_custom_call.1} parent=47 // pred_check_branch
          %325 = sbr.rel (%p323) target = $region52
        $region51: #{tpu_custom_call.1} parent=47 // pred_region
          %326 = dma.done %s319, 1024
        $region52: #{tpu_custom_call.1} parent=47 // pred_fallthru
          _
        %s327 = sand.u32 %s85, 1
        %s328 = scalar_lea.sflag [#allocation11], %s327
        %s329 = sand.u32 %s85, 1
        %s330 = smul.addr %s329, 64
        %s331 = scalar_lea.vmem [#allocation10], %s330
        // Predicated region
        $region53: #{tpu_custom_call.1} parent=47 // pred_check
          %p332 = pneg %p98
        $region54: #{tpu_custom_call.1} parent=47 // pred_check_branch
          %334 = sbr.rel (%p332) target = $region56
        $region55: #{tpu_custom_call.1} parent=47 // pred_region
          %335 = dma.done %s328, 1024
        $region56: #{tpu_custom_call.1} parent=47 // pred_fallthru
          _
        %s336 = sand.u32 %s57, 1
        %s337 = scalar_lea.sflag [#allocation8], %s336
        %s338 = sand.u32 %s57, 1
        %s339 = smul.addr %s338, 64
        %s340 = scalar_lea.vmem [#allocation7], %s339
        %p341 = pneg %p70
        %p342 = pneg %p67
        %s343 = sand.u32 %s85, 1
        %s344 = scalar_lea.sflag [#allocation11], %s343
        %s345 = sand.u32 %s85, 1
        %s346 = smul.addr %s345, 64
        %s347 = scalar_lea.vmem [#allocation10], %s346
        %p348 = pneg %p98
        %p349 = pneg %p95
        %p350 = pneg %p119
        %p351 = pneg %p116
        %p352 = pneg %p140
        %p353 = pneg %p137
        %p354 = pneg %p161
        %p355 = pneg %p158
        %p356 = pneg %p182
        %p357 = pneg %p179
        %p358 = pneg %p203
        %p359 = pneg %p200
        %p360 = pneg %p231
        %p361 = pneg %p228
        %s362 = sand.u32 %s218, 1
        %s363 = scalar_lea.sflag [#allocation9], %s362
        %s364 = sand.u32 %s218, 1
        %s365 = smul.addr %s364, 64
        %s366 = scalar_lea.vmem [#allocation12], %s365
        %s367 = smul.u32 2, %s34
        %s368 = smul.u32 2, %s35
        %s369 = smul.u32 2, %s34
        %p371 = scmp.eq.s32.totalorder %s35, 0
        // Predicated region
        $region57: #{tpu_custom_call.1} parent=47 // pred_check
          %p372 = pneg %p371
        $region58: #{tpu_custom_call.1} parent=47 // pred_check_branch
          %374 = sbr.rel (%p372) target = $region60
        $region59: #{tpu_custom_call.1} parent=47 // pred_region
          %v375 = vld [vmem:[%s322] sm:$0xff]
          %v376 = vld [vmem:[%s322 + $0x8] sm:$0xff]
          %v377 = vld [vmem:[%s322 + $0x10] sm:$0xff]
          %v378 = vld [vmem:[%s322 + $0x18] sm:$0xff]
          %v379 = vld [vmem:[%s322 + $0x20] sm:$0xff]
          %v380 = vld [vmem:[%s322 + $0x28] sm:$0xff]
          %v381 = vld [vmem:[%s322 + $0x30] sm:$0xff]
          %v382 = vld [vmem:[%s322 + $0x38] sm:$0xff]
          %v383 = vpack.c.bf16 %v377, %v375
          %v384 = vpack.c.bf16 %v378, %v376
          %v385 = vpack.c.bf16 %v381, %v379
          %v386 = vpack.c.bf16 %v382, %v380
          %v387 = vld [vmem:[%s2] sm:$0xf]
          %v388 = vld [vmem:[%s3] sm:$0xff]
          %390 = vset.pattern.permute.xlu0 0
          %391 = vperm.xlu0 %390, %v388
          %v392 = vpop.permute.xlu0 %391
          %vm394 = vcmask 261120
          %v396 = vsel %vm394, %v387, 0
          %398 = vmatprep.subr.bf16.mxu0 0
          %399 = vmatpush1.bf16.msra.mxu0 0
          %400 = vmatprep.subr.bf16.mxu0 0
          %401 = vmatpush1.bf16.msra.mxu0 0
          %402 = vmatprep.subr.bf16.mxu0 0
          %403 = vmatpush1.bf16.msra.mxu0 0
          %404 = vmatprep.subr.bf16.mxu0 0
          %405 = vmatpush1.bf16.msra.mxu0 0
          %406 = vmatprep.subr.bf16.mxu0 0
          %407 = vmatpush1.bf16.msra.mxu0 0
          %408 = vmatprep.subr.bf16.mxu0 0
          %409 = vmatpush1.bf16.msra.mxu0 0
          %410 = vmatprep.subr.bf16.mxu0 %v386
          %411 = vmatpush1.bf16.msra.mxu0 %v385
          %412 = vmatprep.subr.bf16.mxu0 %v384
          %413 = vmatpush1.bf16.msra.mxu0 %v383
          %414 = vmatprep.subr.bf16.mxu0 0
          %415 = vmatpush2.bf16.msra.mxu0 0
          %416 = vmatprep.subr.bf16.mxu0 0
          %417 = vmatpush2.bf16.msra.mxu0 0
          %418 = vmatprep.subr.bf16.mxu0 0
          %419 = vmatpush2.bf16.msra.mxu0 0
          %420 = vmatprep.subr.bf16.mxu0 0
          %421 = vmatpush2.bf16.msra.mxu0 0
          %422 = vmatprep.subr.bf16.mxu0 0
          %423 = vmatpush2.bf16.msra.mxu0 0
          %424 = vmatprep.subr.bf16.mxu0 0
          %425 = vmatpush2.bf16.msra.mxu0 0
          %426 = vmatprep.subr.bf16.mxu0 0
          %427 = vmatpush2.bf16.msra.mxu0 0
          %428 = vmatprep.subr.bf16.mxu0 0
          %429 = vmatpush2.bf16.msra.mxu0 0
          %430 = vmatprep.mubr.bf16.mxu0 0
          %431 = vmatmul.mubr.bf16.gmra.mxu0 %v396
          %v432 = vpop.f32.mrf.mxu0
          %v433 = vadd.f32 %v392, %v432
          %v434 = vpop.f32.mrf.mxu0
          %v435 = vadd.f32 %v392, %v434
          %v436 = vpop.f32.mrf.mxu0
          %v437 = vpop.f32.mrf.mxu0
          %438 = vdwg.mxu0
          %v439 = vpack.c.bf16 %v433, %v433
          %v440 = vpack.c.bf16 %v435, %v435
          %v443 = vunpack.c.l.b16 %v439
          %v444 = vunpack.c.l.b16 %v440
          %v445 = vpack.c.b16 %v444, %v443
          %447 = vst [vmem:[#allocation2] sm:$0xff] %v445
          %v448 = vlaneseq
          %vm449 = vcmp.ge.s32.totalorder %v448, 0
          %vm450 = vcmp.lt.s32.totalorder %v448, 256
          %vm451 = vmand %vm449, %vm450
          %452 = vst.msk [vmem:[#allocation3] sm:$0x3] %vm451, -inf
          %453 = vst.msk [vmem:[#allocation4] sm:$0x3] %vm451, 0.0
          %454 = vst [vmem:[#allocation5] sm:$0xff] 0.0
          %455 = vst [vmem:[#allocation5 + $0x8] sm:$0xff] 0.0
          %456 = vst [vmem:[#allocation5 + $0x10] sm:$0xff] 0.0
          %457 = vst [vmem:[#allocation5 + $0x18] sm:$0xff] 0.0
          %458 = vst [vmem:[#allocation5 + $0x20] sm:$0xff] 0.0
          %459 = vst [vmem:[#allocation5 + $0x28] sm:$0xff] 0.0
          %460 = vst [vmem:[#allocation5 + $0x30] sm:$0xff] 0.0
          %461 = vst [vmem:[#allocation5 + $0x38] sm:$0xff] 0.0
        $region60: #{tpu_custom_call.1} parent=47 // pred_fallthru
          _
        %v462 = vld [vmem:[%s331] sm:$0xff]
        %v463 = vld [vmem:[%s331 + $0x8] sm:$0xff]
        %v464 = vld [vmem:[%s331 + $0x10] sm:$0xff]
        %v465 = vld [vmem:[%s331 + $0x18] sm:$0xff]
        %v466 = vld [vmem:[%s331 + $0x20] sm:$0xff]
        %v467 = vld [vmem:[%s331 + $0x28] sm:$0xff]
        %v468 = vld [vmem:[%s331 + $0x30] sm:$0xff]
        %v469 = vld [vmem:[%s331 + $0x38] sm:$0xff]
        %v470 = vpack.c.bf16 %v464, %v462
        %v471 = vpack.c.bf16 %v465, %v463
        %v472 = vpack.c.bf16 %v468, %v466
        %v473 = vpack.c.bf16 %v469, %v467
        %v474 = vld [vmem:[%s4] sm:$0xf]
        %v475 = vld [vmem:[%s4 + $0x4] sm:$0xf]
        %v476 = vld [vmem:[%s4 + $0x8] sm:$0xf]
        %v477 = vld [vmem:[%s4 + $0xc] sm:$0xf]
        %v478 = vld [vmem:[%s4 + $0x10] sm:$0xf]
        %v479 = vld [vmem:[%s5] sm:$0xff]
        %v480 = vld [vmem:[%s5 + $0x8] sm:$0xff]
        %v481 = vld [vmem:[%s5 + $0x10] sm:$0xff]
        %v482 = vld [vmem:[%s5 + $0x18] sm:$0xff]
        %v483 = vld [vmem:[%s5 + $0x20] sm:$0xff]
        %485 = vset.pattern.permute.xlu0 0
        %486 = vperm.xlu0 %485, %v479
        %v487 = vpop.permute.xlu0 %486
        %490 = vset.pattern.permute.xlu0 0
        %491 = vperm.xlu0 %490, %v480
        %v492 = vpop.permute.xlu0 %491
        %495 = vset.pattern.permute.xlu0 0
        %496 = vperm.xlu0 %495, %v481
        %v497 = vpop.permute.xlu0 %496
        %500 = vset.pattern.permute.xlu0 0
        %501 = vperm.xlu0 %500, %v482
        %v502 = vpop.permute.xlu0 %501
        %505 = vset.pattern.permute.xlu0 0
        %506 = vperm.xlu0 %505, %v483
        %v507 = vpop.permute.xlu0 %506
        %v514 = vunpack.c.l.b16 %v474
        %v515 = vunpack.c.l.b16 %v475
        %v516 = vunpack.c.l.b16 %v476
        %v517 = vunpack.c.l.b16 %v477
        %v518 = vunpack.c.l.b16 %v478
        %v519 = vpack.c.b16 %v515, %v514
        %v520 = vpack.c.b16 %v517, %v516
        %v521 = vpack.c.b16 %v518, %v518
        %vm522 = vcmask 261120
        %v524 = vsel %vm522, %v519, 0
        %v527 = vsel %vm522, %v520, 0
        %v530 = vsel %vm522, %v521, 0
        %532 = vmatprep.subr.bf16.mxu0 0
        %533 = vmatpush1.bf16.msra.mxu0 0
        %534 = vmatprep.subr.bf16.mxu0 0
        %535 = vmatpush1.bf16.msra.mxu0 0
        %536 = vmatprep.subr.bf16.mxu0 0
        %537 = vmatpush1.bf16.msra.mxu0 0
        %538 = vmatprep.subr.bf16.mxu0 0
        %539 = vmatpush1.bf16.msra.mxu0 0
        %540 = vmatprep.subr.bf16.mxu0 0
        %541 = vmatpush1.bf16.msra.mxu0 0
        %542 = vmatprep.subr.bf16.mxu0 0
        %543 = vmatpush1.bf16.msra.mxu0 0
        %544 = vmatprep.subr.bf16.mxu0 %v473
        %545 = vmatpush1.bf16.msra.mxu0 %v472
        %546 = vmatprep.subr.bf16.mxu0 %v471
        %547 = vmatpush1.bf16.msra.mxu0 %v470
        %548 = vmatprep.subr.bf16.mxu0 0
        %549 = vmatpush2.bf16.msra.mxu0 0
        %550 = vmatprep.subr.bf16.mxu0 0
        %551 = vmatpush2.bf16.msra.mxu0 0
        %552 = vmatprep.subr.bf16.mxu0 0
        %553 = vmatpush2.bf16.msra.mxu0 0
        %554 = vmatprep.subr.bf16.mxu0 0
        %555 = vmatpush2.bf16.msra.mxu0 0
        %556 = vmatprep.subr.bf16.mxu0 0
        %557 = vmatpush2.bf16.msra.mxu0 0
        %558 = vmatprep.subr.bf16.mxu0 0
        %559 = vmatpush2.bf16.msra.mxu0 0
        %560 = vmatprep.subr.bf16.mxu0 0
        %561 = vmatpush2.bf16.msra.mxu0 0
        %562 = vmatprep.subr.bf16.mxu0 0
        %563 = vmatpush2.bf16.msra.mxu0 0
        %564 = vmatprep.mubr.bf16.mxu0 0
        %565 = vmatmul.mubr.bf16.gmra.mxu0 %v524
        %v566 = vpop.f32.mrf.mxu0
        %v567 = vadd.f32 %v487, %v566
        %v568 = vpop.f32.mrf.mxu0
        %v569 = vadd.f32 %v487, %v568
        %v570 = vpop.f32.mrf.mxu0
        %v571 = vadd.f32 %v492, %v570
        %v572 = vpop.f32.mrf.mxu0
        %v573 = vadd.f32 %v492, %v572
        %574 = vmatprep.mubr.bf16.mxu0 0
        %575 = vmatmul.mubr.bf16.gmra.mxu0 %v527
        %v576 = vpop.f32.mrf.mxu0
        %v577 = vadd.f32 %v497, %v576
        %v578 = vpop.f32.mrf.mxu0
        %v579 = vadd.f32 %v497, %v578
        %v580 = vpop.f32.mrf.mxu0
        %v581 = vadd.f32 %v502, %v580
        %v582 = vpop.f32.mrf.mxu0
        %v583 = vadd.f32 %v502, %v582
        %584 = vmatprep.mubr.bf16.mxu0 0
        %585 = vmatmul.mubr.bf16.gmra.mxu0 %v530
        %v586 = vpop.f32.mrf.mxu0
        %v587 = vadd.f32 %v507, %v586
        %v588 = vpop.f32.mrf.mxu0
        %v589 = vadd.f32 %v507, %v588
        %v590 = vpop.f32.mrf.mxu0
        %v591 = vpop.f32.mrf.mxu0
        %592 = vdwg.mxu0
        %v593 = vpack.c.bf16 %v567, %v567
        %v594 = vpack.c.bf16 %v569, %v569
        %v595 = vld [vmem:[#allocation2] sm:$0xff]
        %596 = vxpose.xlu0.c.b16.start [1/8] %v593, 128
        %597 = vxpose.xlu0.c.b16.cont [2/8] 0, 128
        %598 = vxpose.xlu0.c.b16.cont [3/8] 0, 128
        %599 = vxpose.xlu0.c.b16.cont [4/8] 0, 128
        %600 = vxpose.xlu0.c.b16.cont [5/8] 0, 128
        %601 = vxpose.xlu0.c.b16.cont [6/8] 0, 128
        %602 = vxpose.xlu0.c.b16.cont [7/8] 0, 128
        %603 = vxpose.xlu0.c.b16.end [8/8] 0, 128
        %v604 = vpop.trf.xlu0
        %v605 = vpop.trf.xlu0
        %v606 = vpop.trf.xlu0
        %v607 = vpop.trf.xlu0
        %v608 = vpop.trf.xlu0
        %v609 = vpop.trf.xlu0
        %v610 = vpop.trf.xlu0
        %v611 = vpop.trf.xlu0
        %612 = vxpose.xlu0.c.b16.start [1/8] %v594, 128
        %613 = vxpose.xlu0.c.b16.cont [2/8] 0, 128
        %614 = vxpose.xlu0.c.b16.cont [3/8] 0, 128
        %615 = vxpose.xlu0.c.b16.cont [4/8] 0, 128
        %616 = vxpose.xlu0.c.b16.cont [5/8] 0, 128
        %617 = vxpose.xlu0.c.b16.cont [6/8] 0, 128
        %618 = vxpose.xlu0.c.b16.cont [7/8] 0, 128
        %619 = vxpose.xlu0.c.b16.end [8/8] 0, 128
        %v620 = vpop.trf.xlu0
        %v621 = vpop.trf.xlu0
        %v622 = vpop.trf.xlu0
        %v623 = vpop.trf.xlu0
        %v624 = vpop.trf.xlu0
        %v625 = vpop.trf.xlu0
        %v626 = vpop.trf.xlu0
        %v627 = vpop.trf.xlu0
        %v629 = vunpack.c.l.b16 %v595
        %v630 = vunpack.c.h.b16 %v595
        %v631 = vpack.c.b16 %v629, %v629
        %v632 = vpack.c.b16 %v630, %v630
        %vm633 = vcmask 64512
        %v635 = vsel %vm633, %v604, 0
        %v638 = vsel %vm633, %v605, 0
        %v641 = vsel %vm633, %v606, 0
        %v644 = vsel %vm633, %v607, 0
        %v647 = vsel %vm633, %v608, 0
        %v650 = vsel %vm633, %v609, 0
        %v653 = vsel %vm633, %v610, 0
        %v656 = vsel %vm633, %v611, 0
        %v659 = vsel %vm633, %v620, 0
        %v662 = vsel %vm633, %v621, 0
        %v665 = vsel %vm633, %v622, 0
        %v668 = vsel %vm633, %v623, 0
        %v671 = vsel %vm633, %v624, 0
        %v674 = vsel %vm633, %v625, 0
        %v677 = vsel %vm633, %v626, 0
        %v680 = vsel %vm633, %v627, 0
        %vm682 = vcmask 1043456
        %v684 = vsel %vm682, %v631, 0
        %v687 = vsel %vm682, %v632, 0
        %689 = vmatprep.subr.bf16.mxu0 0
        %690 = vmatpush1.bf16.msra.mxu0 0
        %691 = vmatprep.subr.bf16.mxu0 0
        %692 = vmatpush1.bf16.msra.mxu0 0
        %693 = vmatprep.subr.bf16.mxu0 0
        %694 = vmatpush1.bf16.msra.mxu0 0
        %695 = vmatprep.subr.bf16.mxu0 0
        %696 = vmatpush1.bf16.msra.mxu0 0
        %697 = vmatprep.subr.bf16.mxu0 0
        %698 = vmatpush1.bf16.msra.mxu0 0
        %699 = vmatprep.subr.bf16.mxu0 0
        %700 = vmatpush1.bf16.msra.mxu0 0
        %701 = vmatprep.subr.bf16.mxu0 0
        %702 = vmatpush1.bf16.msra.mxu0 0
        %703 = vmatprep.subr.bf16.mxu0 %v687
        %704 = vmatpush1.bf16.msra.mxu0 %v684
        %705 = vmatprep.subr.bf16.mxu0 0
        %706 = vmatpush2.bf16.msra.mxu0 0
        %707 = vmatprep.subr.bf16.mxu0 0
        %708 = vmatpush2.bf16.msra.mxu0 0
        %709 = vmatprep.subr.bf16.mxu0 0
        %710 = vmatpush2.bf16.msra.mxu0 0
        %711 = vmatprep.subr.bf16.mxu0 0
        %712 = vmatpush2.bf16.msra.mxu0 0
        %713 = vmatprep.subr.bf16.mxu0 0
        %714 = vmatpush2.bf16.msra.mxu0 0
        %715 = vmatprep.subr.bf16.mxu0 0
        %716 = vmatpush2.bf16.msra.mxu0 0
        %717 = vmatprep.subr.bf16.mxu0 0
        %718 = vmatpush2.bf16.msra.mxu0 0
        %719 = vmatprep.subr.bf16.mxu0 0
        %720 = vmatpush2.bf16.msra.mxu0 0
        %721 = vmatprep.mubr.bf16.mxu0 0
        %722 = vmatmul.mubr.bf16.gmra.mxu0 %v635
        %v723 = vpop.f32.mrf.mxu0
        %v724 = vadd.f32 0.0, %v723
        %v725 = vpop.f32.mrf.mxu0
        %v726 = vadd.f32 0.0, %v725
        %v727 = vpop.f32.mrf.mxu0
        %v728 = vadd.f32 0.0, %v727
        %v729 = vpop.f32.mrf.mxu0
        %v730 = vadd.f32 0.0, %v729
        %731 = vmatprep.mubr.bf16.mxu0 0
        %732 = vmatmul.mubr.bf16.gmra.mxu0 %v638
        %v733 = vpop.f32.mrf.mxu0
        %v734 = vadd.f32 0.0, %v733
        %v735 = vpop.f32.mrf.mxu0
        %v736 = vadd.f32 0.0, %v735
        %v737 = vpop.f32.mrf.mxu0
        %v738 = vadd.f32 0.0, %v737
        %v739 = vpop.f32.mrf.mxu0
        %v740 = vadd.f32 0.0, %v739
        %741 = vmatprep.mubr.bf16.mxu0 0
        %742 = vmatmul.mubr.bf16.gmra.mxu0 %v641
        %v743 = vpop.f32.mrf.mxu0
        %v744 = vadd.f32 0.0, %v743
        %v745 = vpop.f32.mrf.mxu0
        %v746 = vadd.f32 0.0, %v745
        %v747 = vpop.f32.mrf.mxu0
        %v748 = vadd.f32 0.0, %v747
        %v749 = vpop.f32.mrf.mxu0
        %v750 = vadd.f32 0.0, %v749
        %751 = vmatprep.mubr.bf16.mxu0 0
        %752 = vmatmul.mubr.bf16.gmra.mxu0 %v644
        %v753 = vpop.f32.mrf.mxu0
        %v754 = vadd.f32 0.0, %v753
        %v755 = vpop.f32.mrf.mxu0
        %v756 = vadd.f32 0.0, %v755
        %v757 = vpop.f32.mrf.mxu0
        %v758 = vadd.f32 0.0, %v757
        %v759 = vpop.f32.mrf.mxu0
        %v760 = vadd.f32 0.0, %v759
        %761 = vmatprep.mubr.bf16.mxu0 0
        %762 = vmatmul.mubr.bf16.gmra.mxu0 %v647
        %v763 = vpop.f32.mrf.mxu0
        %v764 = vadd.f32 0.0, %v763
        %v765 = vpop.f32.mrf.mxu0
        %v766 = vadd.f32 0.0, %v765
        %v767 = vpop.f32.mrf.mxu0
        %v768 = vadd.f32 0.0, %v767
        %v769 = vpop.f32.mrf.mxu0
        %v770 = vadd.f32 0.0, %v769
        %771 = vmatprep.mubr.bf16.mxu0 0
        %772 = vmatmul.mubr.bf16.gmra.mxu0 %v650
        %v773 = vpop.f32.mrf.mxu0
        %v774 = vadd.f32 0.0, %v773
        %v775 = vpop.f32.mrf.mxu0
        %v776 = vadd.f32 0.0, %v775
        %v777 = vpop.f32.mrf.mxu0
        %v778 = vadd.f32 0.0, %v777
        %v779 = vpop.f32.mrf.mxu0
        %v780 = vadd.f32 0.0, %v779
        %781 = vmatprep.mubr.bf16.mxu0 0
        %782 = vmatmul.mubr.bf16.gmra.mxu0 %v653
        %v783 = vpop.f32.mrf.mxu0
        %v784 = vadd.f32 0.0, %v783
        %v785 = vpop.f32.mrf.mxu0
        %v786 = vadd.f32 0.0, %v785
        %v787 = vpop.f32.mrf.mxu0
        %v788 = vadd.f32 0.0, %v787
        %v789 = vpop.f32.mrf.mxu0
        %v790 = vadd.f32 0.0, %v789
        %791 = vmatprep.mubr.bf16.mxu0 0
        %792 = vmatmul.mubr.bf16.gmra.mxu0 %v656
        %v793 = vpop.f32.mrf.mxu0
        %v794 = vadd.f32 0.0, %v793
        %v795 = vpop.f32.mrf.mxu0
        %v796 = vadd.f32 0.0, %v795
        %v797 = vpop.f32.mrf.mxu0
        %v798 = vadd.f32 0.0, %v797
        %v799 = vpop.f32.mrf.mxu0
        %v800 = vadd.f32 0.0, %v799
        %801 = vmatprep.mubr.bf16.mxu0 0
        %802 = vmatmul.mubr.bf16.gmra.mxu0 %v659
        %v803 = vpop.f32.mrf.mxu0
        %v804 = vadd.f32 0.0, %v803
        %v805 = vpop.f32.mrf.mxu0
        %v806 = vadd.f32 0.0, %v805
        %v807 = vpop.f32.mrf.mxu0
        %v808 = vadd.f32 0.0, %v807
        %v809 = vpop.f32.mrf.mxu0
        %v810 = vadd.f32 0.0, %v809
        %811 = vmatprep.mubr.bf16.mxu0 0
        %812 = vmatmul.mubr.bf16.gmra.mxu0 %v662
        %v813 = vpop.f32.mrf.mxu0
        %v814 = vadd.f32 0.0, %v813
        %v815 = vpop.f32.mrf.mxu0
        %v816 = vadd.f32 0.0, %v815
        %v817 = vpop.f32.mrf.mxu0
        %v818 = vadd.f32 0.0, %v817
        %v819 = vpop.f32.mrf.mxu0
        %v820 = vadd.f32 0.0, %v819
        %821 = vmatprep.mubr.bf16.mxu0 0
        %822 = vmatmul.mubr.bf16.gmra.mxu0 %v665
        %v823 = vpop.f32.mrf.mxu0
        %v824 = vadd.f32 0.0, %v823
        %v825 = vpop.f32.mrf.mxu0
        %v826 = vadd.f32 0.0, %v825
        %v827 = vpop.f32.mrf.mxu0
        %v828 = vadd.f32 0.0, %v827
        %v829 = vpop.f32.mrf.mxu0
        %v830 = vadd.f32 0.0, %v829
        %831 = vmatprep.mubr.bf16.mxu0 0
        %832 = vmatmul.mubr.bf16.gmra.mxu0 %v668
        %v833 = vpop.f32.mrf.mxu0
        %v834 = vadd.f32 0.0, %v833
        %v835 = vpop.f32.mrf.mxu0
        %v836 = vadd.f32 0.0, %v835
        %v837 = vpop.f32.mrf.mxu0
        %v838 = vadd.f32 0.0, %v837
        %v839 = vpop.f32.mrf.mxu0
        %v840 = vadd.f32 0.0, %v839
        %841 = vmatprep.mubr.bf16.mxu0 0
        %842 = vmatmul.mubr.bf16.gmra.mxu0 %v671
        %v843 = vpop.f32.mrf.mxu0
        %v844 = vadd.f32 0.0, %v843
        %v845 = vpop.f32.mrf.mxu0
        %v846 = vadd.f32 0.0, %v845
        %v847 = vpop.f32.mrf.mxu0
        %v848 = vadd.f32 0.0, %v847
        %v849 = vpop.f32.mrf.mxu0
        %v850 = vadd.f32 0.0, %v849
        %851 = vmatprep.mubr.bf16.mxu0 0
        %852 = vmatmul.mubr.bf16.gmra.mxu0 %v674
        %v853 = vpop.f32.mrf.mxu0
        %v854 = vadd.f32 0.0, %v853
        %v855 = vpop.f32.mrf.mxu0
        %v856 = vadd.f32 0.0, %v855
        %v857 = vpop.f32.mrf.mxu0
        %v858 = vadd.f32 0.0, %v857
        %v859 = vpop.f32.mrf.mxu0
        %v860 = vadd.f32 0.0, %v859
        %861 = vmatprep.mubr.bf16.mxu0 0
        %862 = vmatmul.mubr.bf16.gmra.mxu0 %v677
        %v863 = vpop.f32.mrf.mxu0
        %v864 = vadd.f32 0.0, %v863
        %v865 = vpop.f32.mrf.mxu0
        %v866 = vadd.f32 0.0, %v865
        %v867 = vpop.f32.mrf.mxu0
        %v868 = vadd.f32 0.0, %v867
        %v869 = vpop.f32.mrf.mxu0
        %v870 = vadd.f32 0.0, %v869
        %871 = vmatprep.mubr.bf16.mxu0 0
        %872 = vmatmul.mubr.bf16.gmra.mxu0 %v680
        %v873 = vpop.f32.mrf.mxu0
        %v874 = vadd.f32 0.0, %v873
        %v875 = vpop.f32.mrf.mxu0
        %v876 = vadd.f32 0.0, %v875
        %v877 = vpop.f32.mrf.mxu0
        %v878 = vadd.f32 0.0, %v877
        %v879 = vpop.f32.mrf.mxu0
        %v880 = vadd.f32 0.0, %v879
        %881 = vdwg.mxu0
        %v882 = vld [vmem:[#allocation3] sm:$0x3]
        %v883 = vmax.f32 %v724, %v734
        %v884 = vmax.f32 %v728, %v738
        %v885 = vmax.f32 %v883, %v744
        %v886 = vmax.f32 %v884, %v748
        %v887 = vmax.f32 %v885, %v754
        %v888 = vmax.f32 %v886, %v758
        %v889 = vmax.f32 %v887, %v764
        %v890 = vmax.f32 %v888, %v768
        %v891 = vmax.f32 %v889, %v774
        %v892 = vmax.f32 %v890, %v778
        %v893 = vmax.f32 %v891, %v784
        %v894 = vmax.f32 %v892, %v788
        %v895 = vmax.f32 %v893, %v794
        %v896 = vmax.f32 %v894, %v798
        %v897 = vmax.f32 %v895, %v804
        %v898 = vmax.f32 %v896, %v808
        %v899 = vmax.f32 %v897, %v814
        %v900 = vmax.f32 %v898, %v818
        %v901 = vmax.f32 %v899, %v824
        %v902 = vmax.f32 %v900, %v828
        %v903 = vmax.f32 %v901, %v834
        %v904 = vmax.f32 %v902, %v838
        %v905 = vmax.f32 %v903, %v844
        %v906 = vmax.f32 %v904, %v848
        %v907 = vmax.f32 %v905, %v854
        %v908 = vmax.f32 %v906, %v858
        %v909 = vmax.f32 %v907, %v864
        %v910 = vmax.f32 %v908, %v868
        %v911 = vmax.f32 %v909, %v874
        %v912 = vmax.f32 %v910, %v878
        %v913 = vmax.f32 %v911, %v912
        %v914 = vrot.slane %v913, 4
        %v915 = vmax.f32 %v913, %v914
        %v916 = vrot.slane %v915, 2
        %v917 = vmax.f32 %v915, %v916
        %v918 = vrot.slane %v917, 1
        %v919 = vmax.f32 %v917, %v918
        %v920 = vmax.f32 %v726, %v736
        %v921 = vmax.f32 %v730, %v740
        %v922 = vmax.f32 %v920, %v746
        %v923 = vmax.f32 %v921, %v750
        %v924 = vmax.f32 %v922, %v756
        %v925 = vmax.f32 %v923, %v760
        %v926 = vmax.f32 %v924, %v766
        %v927 = vmax.f32 %v925, %v770
        %v928 = vmax.f32 %v926, %v776
        %v929 = vmax.f32 %v927, %v780
        %v930 = vmax.f32 %v928, %v786
        %v931 = vmax.f32 %v929, %v790
        %v932 = vmax.f32 %v930, %v796
        %v933 = vmax.f32 %v931, %v800
        %v934 = vmax.f32 %v932, %v806
        %v935 = vmax.f32 %v933, %v810
        %v936 = vmax.f32 %v934, %v816
        %v937 = vmax.f32 %v935, %v820
        %v938 = vmax.f32 %v936, %v826
        %v939 = vmax.f32 %v937, %v830
        %v940 = vmax.f32 %v938, %v836
        %v941 = vmax.f32 %v939, %v840
        %v942 = vmax.f32 %v940, %v846
        %v943 = vmax.f32 %v941, %v850
        %v944 = vmax.f32 %v942, %v856
        %v945 = vmax.f32 %v943, %v860
        %v946 = vmax.f32 %v944, %v866
        %v947 = vmax.f32 %v945, %v870
        %v948 = vmax.f32 %v946, %v876
        %v949 = vmax.f32 %v947, %v880
        %v950 = vmax.f32 %v948, %v949
        %v951 = vrot.slane %v950, 4
        %v952 = vmax.f32 %v950, %v951
        %v953 = vrot.slane %v952, 2
        %v954 = vmax.f32 %v952, %v953
        %v955 = vrot.slane %v954, 1
        %v956 = vmax.f32 %v954, %v955
        %v959 = vcombine.low %v919, %v956
        %v961 = vunpack.c.l.s4 1966171168
        %v962 = vunpack.c.0.s8 %v961
        %v963 = vlaneseq
        %v964 = vshrl.u32 %v963, 7
        %v965 = vsub.s32 %v962, %v964
        %v966 = vrot.slane %v959, %v965
        %v968 = vunpack.c.l.s4 1966171168
        %v969 = vunpack.c.0.s8 %v968
        %v970 = vlaneseq
        %v971 = vshrl.u32 %v970, 7
        %v972 = vsub.s32 %v969, %v971
        %v973 = vrot.slane %v966, %v972
        %v975 = vmax.f32 %v882, %v973
        %v976 = vsub.f32 %v882, %v975
        %v977 = vmul.f32 %v976, 1.442695
        %v978 = vpow.pop %v977
        %v980 = vlaneseq
        %v981 = vshrl.u32 %v980, 7
        %v982 = vsub.s32 0, %v981
        %v983 = vrot.slane %v975, %v982
        %v984 = vlaneseq
        %v985 = vshrl.u32 %v984, 7
        %v986 = vsub.s32 1, %v985
        %v987 = vrot.slane %v975, %v986
        %v990 = vsub.f32 %v724, %v983
        %v991 = vsub.f32 %v726, %v987
        %v992 = vsub.f32 %v728, %v983
        %v993 = vsub.f32 %v730, %v987
        %v994 = vsub.f32 %v734, %v983
        %v995 = vsub.f32 %v736, %v987
        %v996 = vsub.f32 %v738, %v983
        %v997 = vsub.f32 %v740, %v987
        %v998 = vsub.f32 %v744, %v983
        %v999 = vsub.f32 %v746, %v987
        %v1000 = vsub.f32 %v748, %v983
        %v1001 = vsub.f32 %v750, %v987
        %v1002 = vsub.f32 %v754, %v983
        %v1003 = vsub.f32 %v756, %v987
        %v1004 = vsub.f32 %v758, %v983
        %v1005 = vsub.f32 %v760, %v987
        %v1006 = vsub.f32 %v764, %v983
        %v1007 = vsub.f32 %v766, %v987
        %v1008 = vsub.f32 %v768, %v983
        %v1009 = vsub.f32 %v770, %v987
        %v1010 = vsub.f32 %v774, %v983
        %v1011 = vsub.f32 %v776, %v987
        %v1012 = vsub.f32 %v778, %v983
        %v1013 = vsub.f32 %v780, %v987
        %v1014 = vsub.f32 %v784, %v983
        %v1015 = vsub.f32 %v786, %v987
        %v1016 = vsub.f32 %v788, %v983
        %v1017 = vsub.f32 %v790, %v987
        %v1018 = vsub.f32 %v794, %v983
        %v1019 = vsub.f32 %v796, %v987
        %v1020 = vsub.f32 %v798, %v983
        %v1021 = vsub.f32 %v800, %v987
        %v1022 = vsub.f32 %v804, %v983
        %v1023 = vsub.f32 %v806, %v987
        %v1024 = vsub.f32 %v808, %v983
        %v1025 = vsub.f32 %v810, %v987
        %v1026 = vsub.f32 %v814, %v983
        %v1027 = vsub.f32 %v816, %v987
        %v1028 = vsub.f32 %v818, %v983
        %v1029 = vsub.f32 %v820, %v987
        %v1030 = vsub.f32 %v824, %v983
        %v1031 = vsub.f32 %v826, %v987
        %v1032 = vsub.f32 %v828, %v983
        %v1033 = vsub.f32 %v830, %v987
        %v1034 = vsub.f32 %v834, %v983
        %v1035 = vsub.f32 %v836, %v987
        %v1036 = vsub.f32 %v838, %v983
        %v1037 = vsub.f32 %v840, %v987
        %v1038 = vsub.f32 %v844, %v983
        %v1039 = vsub.f32 %v846, %v987
        %v1040 = vsub.f32 %v848, %v983
        %v1041 = vsub.f32 %v850, %v987
        %v1042 = vsub.f32 %v854, %v983
        %v1043 = vsub.f32 %v856, %v987
        %v1044 = vsub.f32 %v858, %v983
        %v1045 = vsub.f32 %v860, %v987
        %v1046 = vsub.f32 %v864, %v983
        %v1047 = vsub.f32 %v866, %v987
        %v1048 = vsub.f32 %v868, %v983
        %v1049 = vsub.f32 %v870, %v987
        %v1050 = vsub.f32 %v874, %v983
        %v1051 = vsub.f32 %v876, %v987
        %v1052 = vsub.f32 %v878, %v983
        %v1053 = vsub.f32 %v880, %v987
        %v1054 = vmul.f32 %v990, 1.442695
        %v1055 = vpow.pop %v1054
        %v1056 = vmul.f32 %v991, 1.442695
        %v1057 = vpow.pop %v1056
        %v1058 = vmul.f32 %v992, 1.442695
        %v1059 = vpow.pop %v1058
        %v1060 = vmul.f32 %v993, 1.442695
        %v1061 = vpow.pop %v1060
        %v1062 = vmul.f32 %v994, 1.442695
        %v1063 = vpow.pop %v1062
        %v1064 = vmul.f32 %v995, 1.442695
        %v1065 = vpow.pop %v1064
        %v1066 = vmul.f32 %v996, 1.442695
        %v1067 = vpow.pop %v1066
        %v1068 = vmul.f32 %v997, 1.442695
        %v1069 = vpow.pop %v1068
        %v1070 = vmul.f32 %v998, 1.442695
        %v1071 = vpow.pop %v1070
        %v1072 = vmul.f32 %v999, 1.442695
        %v1073 = vpow.pop %v1072
        %v1074 = vmul.f32 %v1000, 1.442695
        %v1075 = vpow.pop %v1074
        %v1076 = vmul.f32 %v1001, 1.442695
        %v1077 = vpow.pop %v1076
        %v1078 = vmul.f32 %v1002, 1.442695
        %v1079 = vpow.pop %v1078
        %v1080 = vmul.f32 %v1003, 1.442695
        %v1081 = vpow.pop %v1080
        %v1082 = vmul.f32 %v1004, 1.442695
        %v1083 = vpow.pop %v1082
        %v1084 = vmul.f32 %v1005, 1.442695
        %v1085 = vpow.pop %v1084
        %v1086 = vmul.f32 %v1006, 1.442695
        %v1087 = vpow.pop %v1086
        %v1088 = vmul.f32 %v1007, 1.442695
        %v1089 = vpow.pop %v1088
        %v1090 = vmul.f32 %v1008, 1.442695
        %v1091 = vpow.pop %v1090
        %v1092 = vmul.f32 %v1009, 1.442695
        %v1093 = vpow.pop %v1092
        %v1094 = vmul.f32 %v1010, 1.442695
        %v1095 = vpow.pop %v1094
        %v1096 = vmul.f32 %v1011, 1.442695
        %v1097 = vpow.pop %v1096
        %v1098 = vmul.f32 %v1012, 1.442695
        %v1099 = vpow.pop %v1098
        %v1100 = vmul.f32 %v1013, 1.442695
        %v1101 = vpow.pop %v1100
        %v1102 = vmul.f32 %v1014, 1.442695
        %v1103 = vpow.pop %v1102
        %v1104 = vmul.f32 %v1015, 1.442695
        %v1105 = vpow.pop %v1104
        %v1106 = vmul.f32 %v1016, 1.442695
        %v1107 = vpow.pop %v1106
        %v1108 = vmul.f32 %v1017, 1.442695
        %v1109 = vpow.pop %v1108
        %v1110 = vmul.f32 %v1018, 1.442695
        %v1111 = vpow.pop %v1110
        %v1112 = vmul.f32 %v1019, 1.442695
        %v1113 = vpow.pop %v1112
        %v1114 = vmul.f32 %v1020, 1.442695
        %v1115 = vpow.pop %v1114
        %v1116 = vmul.f32 %v1021, 1.442695
        %v1117 = vpow.pop %v1116
        %v1118 = vmul.f32 %v1022, 1.442695
        %v1119 = vpow.pop %v1118
        %v1120 = vmul.f32 %v1023, 1.442695
        %v1121 = vpow.pop %v1120
        %v1122 = vmul.f32 %v1024, 1.442695
        %v1123 = vpow.pop %v1122
        %v1124 = vmul.f32 %v1025, 1.442695
        %v1125 = vpow.pop %v1124
        %v1126 = vmul.f32 %v1026, 1.442695
        %v1127 = vpow.pop %v1126
        %v1128 = vmul.f32 %v1027, 1.442695
        %v1129 = vpow.pop %v1128
        %v1130 = vmul.f32 %v1028, 1.442695
        %v1131 = vpow.pop %v1130
        %v1132 = vmul.f32 %v1029, 1.442695
        %v1133 = vpow.pop %v1132
        %v1134 = vmul.f32 %v1030, 1.442695
        %v1135 = vpow.pop %v1134
        %v1136 = vmul.f32 %v1031, 1.442695
        %v1137 = vpow.pop %v1136
        %v1138 = vmul.f32 %v1032, 1.442695
        %v1139 = vpow.pop %v1138
        %v1140 = vmul.f32 %v1033, 1.442695
        %v1141 = vpow.pop %v1140
        %v1142 = vmul.f32 %v1034, 1.442695
        %v1143 = vpow.pop %v1142
        %v1144 = vmul.f32 %v1035, 1.442695
        %v1145 = vpow.pop %v1144
        %v1146 = vmul.f32 %v1036, 1.442695
        %v1147 = vpow.pop %v1146
        %v1148 = vmul.f32 %v1037, 1.442695
        %v1149 = vpow.pop %v1148
        %v1150 = vmul.f32 %v1038, 1.442695
        %v1151 = vpow.pop %v1150
        %v1152 = vmul.f32 %v1039, 1.442695
        %v1153 = vpow.pop %v1152
        %v1154 = vmul.f32 %v1040, 1.442695
        %v1155 = vpow.pop %v1154
        %v1156 = vmul.f32 %v1041, 1.442695
        %v1157 = vpow.pop %v1156
        %v1158 = vmul.f32 %v1042, 1.442695
        %v1159 = vpow.pop %v1158
        %v1160 = vmul.f32 %v1043, 1.442695
        %v1161 = vpow.pop %v1160
        %v1162 = vmul.f32 %v1044, 1.442695
        %v1163 = vpow.pop %v1162
        %v1164 = vmul.f32 %v1045, 1.442695
        %v1165 = vpow.pop %v1164
        %v1166 = vmul.f32 %v1046, 1.442695
        %v1167 = vpow.pop %v1166
        %v1168 = vmul.f32 %v1047, 1.442695
        %v1169 = vpow.pop %v1168
        %v1170 = vmul.f32 %v1048, 1.442695
        %v1171 = vpow.pop %v1170
        %v1172 = vmul.f32 %v1049, 1.442695
        %v1173 = vpow.pop %v1172
        %v1174 = vmul.f32 %v1050, 1.442695
        %v1175 = vpow.pop %v1174
        %v1176 = vmul.f32 %v1051, 1.442695
        %v1177 = vpow.pop %v1176
        %v1178 = vmul.f32 %v1052, 1.442695
        %v1179 = vpow.pop %v1178
        %v1180 = vmul.f32 %v1053, 1.442695
        %v1181 = vpow.pop %v1180
        %v1182 = vld [vmem:[#allocation4] sm:$0x3]
        %v1183 = vmul.f32 %v978, %v1182
        %v1184 = vadd.f32 %v1055, %v1059
        %v1185 = vadd.f32 %v1184, %v1063
        %v1186 = vadd.f32 %v1185, %v1067
        %v1187 = vadd.f32 %v1186, %v1071
        %v1188 = vadd.f32 %v1187, %v1075
        %v1189 = vadd.f32 %v1188, %v1079
        %v1190 = vadd.f32 %v1189, %v1083
        %v1191 = vadd.f32 %v1190, %v1087
        %v1192 = vadd.f32 %v1191, %v1091
        %v1193 = vadd.f32 %v1192, %v1095
        %v1194 = vadd.f32 %v1193, %v1099
        %v1195 = vadd.f32 %v1194, %v1103
        %v1196 = vadd.f32 %v1195, %v1107
        %v1197 = vadd.f32 %v1196, %v1111
        %v1198 = vadd.f32 %v1197, %v1115
        %v1199 = vadd.f32 %v1198, %v1119
        %v1200 = vadd.f32 %v1199, %v1123
        %v1201 = vadd.f32 %v1200, %v1127
        %v1202 = vadd.f32 %v1201, %v1131
        %v1203 = vadd.f32 %v1202, %v1135
        %v1204 = vadd.f32 %v1203, %v1139
        %v1205 = vadd.f32 %v1204, %v1143
        %v1206 = vadd.f32 %v1205, %v1147
        %v1207 = vadd.f32 %v1206, %v1151
        %v1208 = vadd.f32 %v1207, %v1155
        %v1209 = vadd.f32 %v1208, %v1159
        %v1210 = vadd.f32 %v1209, %v1163
        %v1211 = vadd.f32 %v1210, %v1167
        %v1212 = vadd.f32 %v1211, %v1171
        %v1213 = vadd.f32 %v1212, %v1175
        %v1214 = vadd.f32 %v1213, %v1179
        %v1215 = vrot.slane %v1214, 4
        %v1216 = vadd.f32 %v1214, %v1215
        %v1217 = vrot.slane %v1216, 2
        %v1218 = vadd.f32 %v1216, %v1217
        %v1219 = vrot.slane %v1218, 1
        %v1220 = vadd.f32 %v1218, %v1219
        %v1221 = vadd.f32 %v1057, %v1061
        %v1222 = vadd.f32 %v1221, %v1065
        %v1223 = vadd.f32 %v1222, %v1069
        %v1224 = vadd.f32 %v1223, %v1073
        %v1225 = vadd.f32 %v1224, %v1077
        %v1226 = vadd.f32 %v1225, %v1081
        %v1227 = vadd.f32 %v1226, %v1085
        %v1228 = vadd.f32 %v1227, %v1089
        %v1229 = vadd.f32 %v1228, %v1093
        %v1230 = vadd.f32 %v1229, %v1097
        %v1231 = vadd.f32 %v1230, %v1101
        %v1232 = vadd.f32 %v1231, %v1105
        %v1233 = vadd.f32 %v1232, %v1109
        %v1234 = vadd.f32 %v1233, %v1113
        %v1235 = vadd.f32 %v1234, %v1117
        %v1236 = vadd.f32 %v1235, %v1121
        %v1237 = vadd.f32 %v1236, %v1125
        %v1238 = vadd.f32 %v1237, %v1129
        %v1239 = vadd.f32 %v1238, %v1133
        %v1240 = vadd.f32 %v1239, %v1137
        %v1241 = vadd.f32 %v1240, %v1141
        %v1242 = vadd.f32 %v1241, %v1145
        %v1243 = vadd.f32 %v1242, %v1149
        %v1244 = vadd.f32 %v1243, %v1153
        %v1245 = vadd.f32 %v1244, %v1157
        %v1246 = vadd.f32 %v1245, %v1161
        %v1247 = vadd.f32 %v1246, %v1165
        %v1248 = vadd.f32 %v1247, %v1169
        %v1249 = vadd.f32 %v1248, %v1173
        %v1250 = vadd.f32 %v1249, %v1177
        %v1251 = vadd.f32 %v1250, %v1181
        %v1252 = vrot.slane %v1251, 4
        %v1253 = vadd.f32 %v1251, %v1252
        %v1254 = vrot.slane %v1253, 2
        %v1255 = vadd.f32 %v1253, %v1254
        %v1256 = vrot.slane %v1255, 1
        %v1257 = vadd.f32 %v1255, %v1256
        %v1260 = vcombine.low %v1220, %v1257
        %v1262 = vunpack.c.l.s4 1966171168
        %v1263 = vunpack.c.0.s8 %v1262
        %v1264 = vlaneseq
        %v1265 = vshrl.u32 %v1264, 7
        %v1266 = vsub.s32 %v1263, %v1265
        %v1267 = vrot.slane %v1260, %v1266
        %v1269 = vunpack.c.l.s4 1966171168
        %v1270 = vunpack.c.0.s8 %v1269
        %v1271 = vlaneseq
        %v1272 = vshrl.u32 %v1271, 7
        %v1273 = vsub.s32 %v1270, %v1272
        %v1274 = vrot.slane %v1267, %v1273
        %v1276 = vadd.f32 %v1183, %v1274
        %v1277 = vlaneseq
        %vm1278 = vcmp.ge.s32.totalorder %v1277, 0
        %vm1279 = vcmp.lt.s32.totalorder %v1277, 256
        %vm1280 = vmand %vm1278, %vm1279
        %1281 = vst.msk [vmem:[#allocation4] sm:$0x3] %vm1280, %v1276
        %v1282 = vld [vmem:[#allocation5] sm:$0xff]
        %v1283 = vld [vmem:[#allocation5 + $0x8] sm:$0xff]
        %v1284 = vld [vmem:[#allocation5 + $0x10] sm:$0xff]
        %v1285 = vld [vmem:[#allocation5 + $0x18] sm:$0xff]
        %v1286 = vld [vmem:[#allocation5 + $0x20] sm:$0xff]
        %v1287 = vld [vmem:[#allocation5 + $0x28] sm:$0xff]
        %v1288 = vld [vmem:[#allocation5 + $0x30] sm:$0xff]
        %v1289 = vld [vmem:[#allocation5 + $0x38] sm:$0xff]
        %v1291 = vlaneseq
        %v1292 = vshrl.u32 %v1291, 7
        %v1293 = vsub.s32 0, %v1292
        %v1294 = vrot.slane %v978, %v1293
        %v1295 = vlaneseq
        %v1296 = vshrl.u32 %v1295, 7
        %v1297 = vsub.s32 1, %v1296
        %v1298 = vrot.slane %v978, %v1297
        %v1301 = vmul.f32 %v1294, %v1282
        %v1302 = vmul.f32 %v1298, %v1283
        %v1303 = vmul.f32 %v1294, %v1284
        %v1304 = vmul.f32 %v1298, %v1285
        %v1305 = vmul.f32 %v1294, %v1286
        %v1306 = vmul.f32 %v1298, %v1287
        %v1307 = vmul.f32 %v1294, %v1288
        %v1308 = vmul.f32 %v1298, %v1289
        %v1309 = vpack.c.bf16 %v577, %v571
        %v1310 = vpack.c.bf16 %v579, %v573
        %v1311 = vpack.c.bf16 %v587, %v581
        %v1312 = vpack.c.bf16 %v589, %v583
        %v1313 = vpack.c.bf16 %v1059, %v1055
        %v1314 = vpack.c.bf16 %v1061, %v1057
        %v1315 = vpack.c.bf16 %v1067, %v1063
        %v1316 = vpack.c.bf16 %v1069, %v1065
        %v1317 = vpack.c.bf16 %v1075, %v1071
        %v1318 = vpack.c.bf16 %v1077, %v1073
        %v1319 = vpack.c.bf16 %v1083, %v1079
        %v1320 = vpack.c.bf16 %v1085, %v1081
        %v1321 = vpack.c.bf16 %v1091, %v1087
        %v1322 = vpack.c.bf16 %v1093, %v1089
        %v1323 = vpack.c.bf16 %v1099, %v1095
        %v1324 = vpack.c.bf16 %v1101, %v1097
        %v1325 = vpack.c.bf16 %v1107, %v1103
        %v1326 = vpack.c.bf16 %v1109, %v1105
        %v1327 = vpack.c.bf16 %v1115, %v1111
        %v1328 = vpack.c.bf16 %v1117, %v1113
        %v1329 = vpack.c.bf16 %v1123, %v1119
        %v1330 = vpack.c.bf16 %v1125, %v1121
        %v1331 = vpack.c.bf16 %v1131, %v1127
        %v1332 = vpack.c.bf16 %v1133, %v1129
        %v1333 = vpack.c.bf16 %v1139, %v1135
        %v1334 = vpack.c.bf16 %v1141, %v1137
        %v1335 = vpack.c.bf16 %v1147, %v1143
        %v1336 = vpack.c.bf16 %v1149, %v1145
        %v1337 = vpack.c.bf16 %v1155, %v1151
        %v1338 = vpack.c.bf16 %v1157, %v1153
        %v1339 = vpack.c.bf16 %v1163, %v1159
        %v1340 = vpack.c.bf16 %v1165, %v1161
        %v1341 = vpack.c.bf16 %v1171, %v1167
        %v1342 = vpack.c.bf16 %v1173, %v1169
        %v1343 = vpack.c.bf16 %v1179, %v1175
        %v1344 = vpack.c.bf16 %v1181, %v1177
        %1345 = vmatprep.subr.bf16.mxu0 %v1328
        %1346 = vmatpush1.bf16.msra.mxu0 %v1327
        %1347 = vmatprep.subr.bf16.mxu0 %v1326
        %1348 = vmatpush1.bf16.msra.mxu0 %v1325
        %1349 = vmatprep.subr.bf16.mxu0 %v1324
        %1350 = vmatpush1.bf16.msra.mxu0 %v1323
        %1351 = vmatprep.subr.bf16.mxu0 %v1322
        %1352 = vmatpush1.bf16.msra.mxu0 %v1321
        %1353 = vmatprep.subr.bf16.mxu0 %v1320
        %1354 = vmatpush1.bf16.msra.mxu0 %v1319
        %1355 = vmatprep.subr.bf16.mxu0 %v1318
        %1356 = vmatpush1.bf16.msra.mxu0 %v1317
        %1357 = vmatprep.subr.bf16.mxu0 %v1316
        %1358 = vmatpush1.bf16.msra.mxu0 %v1315
        %1359 = vmatprep.subr.bf16.mxu0 %v1314
        %1360 = vmatpush1.bf16.msra.mxu0 %v1313
        %1361 = vmatprep.subr.bf16.mxu0 %v1344
        %1362 = vmatpush2.bf16.msra.mxu0 %v1343
        %1363 = vmatprep.subr.bf16.mxu0 %v1342
        %1364 = vmatpush2.bf16.msra.mxu0 %v1341
        %1365 = vmatprep.subr.bf16.mxu0 %v1340
        %1366 = vmatpush2.bf16.msra.mxu0 %v1339
        %1367 = vmatprep.subr.bf16.mxu0 %v1338
        %1368 = vmatpush2.bf16.msra.mxu0 %v1337
        %1369 = vmatprep.subr.bf16.mxu0 %v1336
        %1370 = vmatpush2.bf16.msra.mxu0 %v1335
        %1371 = vmatprep.subr.bf16.mxu0 %v1334
        %1372 = vmatpush2.bf16.msra.mxu0 %v1333
        %1373 = vmatprep.subr.bf16.mxu0 %v1332
        %1374 = vmatpush2.bf16.msra.mxu0 %v1331
        %1375 = vmatprep.subr.bf16.mxu0 %v1330
        %1376 = vmatpush2.bf16.msra.mxu0 %v1329
        %1377 = vmatprep.mubr.bf16.mxu0 %v1310
        %1378 = vmatmul.mubr.bf16.gmra.mxu0 %v1309
        %v1379 = vpop.f32.mrf.mxu0
        %v1380 = vadd.f32 0.0, %v1379
        %v1381 = vpop.f32.mrf.mxu0
        %v1382 = vadd.f32 0.0, %v1381
        %v1383 = vpop.f32.mrf.mxu0
        %v1384 = vadd.f32 0.0, %v1383
        %v1385 = vpop.f32.mrf.mxu0
        %v1386 = vadd.f32 0.0, %v1385
        %1387 = vmatprep.mubr.bf16.mxu0 %v1312
        %1388 = vmatmul.mubr.bf16.gmra.mxu0 %v1311
        %v1389 = vpop.f32.mrf.mxu0
        %v1390 = vadd.f32 0.0, %v1389
        %v1391 = vpop.f32.mrf.mxu0
        %v1392 = vadd.f32 0.0, %v1391
        %v1393 = vpop.f32.mrf.mxu0
        %v1394 = vadd.f32 0.0, %v1393
        %v1395 = vpop.f32.mrf.mxu0
        %v1396 = vadd.f32 0.0, %v1395
        %1397 = vdwg.mxu0
        %v1398 = vadd.f32 %v1301, %v1380
        %v1399 = vadd.f32 %v1302, %v1382
        %v1400 = vadd.f32 %v1303, %v1384
        %v1401 = vadd.f32 %v1304, %v1386
        %v1402 = vadd.f32 %v1305, %v1390
        %v1403 = vadd.f32 %v1306, %v1392
        %v1404 = vadd.f32 %v1307, %v1394
        %v1405 = vadd.f32 %v1308, %v1396
        %1406 = vst [vmem:[#allocation5] sm:$0xff] %v1398
        %1407 = vst [vmem:[#allocation5 + $0x8] sm:$0xff] %v1399
        %1408 = vst [vmem:[#allocation5 + $0x10] sm:$0xff] %v1400
        %1409 = vst [vmem:[#allocation5 + $0x18] sm:$0xff] %v1401
        %1410 = vst [vmem:[#allocation5 + $0x20] sm:$0xff] %v1402
        %1411 = vst [vmem:[#allocation5 + $0x28] sm:$0xff] %v1403
        %1412 = vst [vmem:[#allocation5 + $0x30] sm:$0xff] %v1404
        %1413 = vst [vmem:[#allocation5 + $0x38] sm:$0xff] %v1405
        %1414 = vst.msk [vmem:[#allocation3] sm:$0x3] %vm1280, %v975
        // Predicated region
        $region61: #{tpu_custom_call.1} parent=47 // pred_check
          %p1415 = pneg %p371
        $region62: #{tpu_custom_call.1} parent=47 // pred_check_branch
          %1417 = sbr.rel (%p1415) target = $region64
        $region63: #{tpu_custom_call.1} parent=47 // pred_region
          %v1418 = vld [vmem:[#allocation4] sm:$0x3]
          %v1419 = vrcp.pop %v1418
          %v1420 = vmul.f32 1.0, %v1419
          %v1421 = vld [vmem:[#allocation5] sm:$0xff]
          %v1422 = vld [vmem:[#allocation5 + $0x8] sm:$0xff]
          %v1423 = vld [vmem:[#allocation5 + $0x10] sm:$0xff]
          %v1424 = vld [vmem:[#allocation5 + $0x18] sm:$0xff]
          %v1425 = vld [vmem:[#allocation5 + $0x20] sm:$0xff]
          %v1426 = vld [vmem:[#allocation5 + $0x28] sm:$0xff]
          %v1427 = vld [vmem:[#allocation5 + $0x30] sm:$0xff]
          %v1428 = vld [vmem:[#allocation5 + $0x38] sm:$0xff]
          %v1430 = vlaneseq
          %v1431 = vshrl.u32 %v1430, 7
          %v1432 = vsub.s32 0, %v1431
          %v1433 = vrot.slane %v1420, %v1432
          %v1434 = vlaneseq
          %v1435 = vshrl.u32 %v1434, 7
          %v1436 = vsub.s32 1, %v1435
          %v1437 = vrot.slane %v1420, %v1436
          %v1440 = vmul.f32 %v1421, %v1433
          %v1441 = vmul.f32 %v1422, %v1437
          %v1442 = vmul.f32 %v1423, %v1433
          %v1443 = vmul.f32 %v1424, %v1437
          %v1444 = vmul.f32 %v1425, %v1433
          %v1445 = vmul.f32 %v1426, %v1437
          %v1446 = vmul.f32 %v1427, %v1433
          %v1447 = vmul.f32 %v1428, %v1437
          %s1448 = sld [smem:[#allocation6]]
          %v1449 = vstv %s1448
          %v1450 = vmul.f32 %v1449, %v1440
          %v1451 = vmul.f32 %v1449, %v1441
          %v1452 = vmul.f32 %v1449, %v1442
          %v1453 = vmul.f32 %v1449, %v1443
          %v1454 = vmul.f32 %v1449, %v1444
          %v1455 = vmul.f32 %v1449, %v1445
          %v1456 = vmul.f32 %v1449, %v1446
          %v1457 = vmul.f32 %v1449, %v1447
          %v1458 = vld [vmem:[%s322] sm:$0xff]
          %v1459 = vld [vmem:[%s322 + $0x8] sm:$0xff]
          %v1460 = vld [vmem:[%s322 + $0x10] sm:$0xff]
          %v1461 = vld [vmem:[%s322 + $0x18] sm:$0xff]
          %v1462 = vld [vmem:[%s322 + $0x20] sm:$0xff]
          %v1463 = vld [vmem:[%s322 + $0x28] sm:$0xff]
          %v1464 = vld [vmem:[%s322 + $0x30] sm:$0xff]
          %v1465 = vld [vmem:[%s322 + $0x38] sm:$0xff]
          %v1466 = vadd.f32 %v1450, %v1458
          %v1467 = vadd.f32 %v1451, %v1459
          %v1468 = vadd.f32 %v1452, %v1460
          %v1469 = vadd.f32 %v1453, %v1461
          %v1470 = vadd.f32 %v1454, %v1462
          %v1471 = vadd.f32 %v1455, %v1463
          %v1472 = vadd.f32 %v1456, %v1464
          %v1473 = vadd.f32 %v1457, %v1465
          %1474 = vst [vmem:[%s366] sm:$0xff] %v1466
          %1475 = vst [vmem:[%s366 + $0x8] sm:$0xff] %v1467
          %1476 = vst [vmem:[%s366 + $0x10] sm:$0xff] %v1468
          %1477 = vst [vmem:[%s366 + $0x18] sm:$0xff] %v1469
          %1478 = vst [vmem:[%s366 + $0x20] sm:$0xff] %v1470
          %1479 = vst [vmem:[%s366 + $0x28] sm:$0xff] %v1471
          %1480 = vst [vmem:[%s366 + $0x30] sm:$0xff] %v1472
          %1481 = vst [vmem:[%s366 + $0x38] sm:$0xff] %v1473
        $region64: #{tpu_custom_call.1} parent=47 // pred_fallthru
          _
        %s1482 = sand.u32 %s218, 1
        %s1483 = scalar_lea.sflag [#allocation9], %s1482
        %s1484 = sand.u32 %s218, 1
        %s1485 = smul.addr %s1484, 64
        %s1486 = scalar_lea.vmem [#allocation12], %s1485
        // Predicated region
        $region65: #{tpu_custom_call.1} parent=47 // pred_check
          %p1487 = pneg %p228
        $region66: #{tpu_custom_call.1} parent=47 // pred_check_branch
          %1489 = sbr.rel (%p1487) target = $region68
        $region67: #{tpu_custom_call.1} parent=47 // pred_region
          %s1490 = smul.u32 2, %s34
          %s1492 = ssub.s32 1024, 1024
          %1493 = vsyncadd %s1483, %s1492
          %s1494 = smul.addr %s33, 8
          %s1495 = sadd.s32 %s1490, %s1494
          %s1496 = smul.addr %s1495, 128
          %s1497 = scalar_lea.hbm %s7, %s1496
          %s1498 = sshll.u32 %s1486, 4
          %s1499 = int_to_ptr.vmem [resolvable:$true] %s1498
          %1504 = dma.vmem_to_hbm [thread:$0]  %s1499, 1024, %s1497, %s1483, 256, 256, 16
        $region68: #{tpu_custom_call.1} parent=47 // pred_fallthru
          _
      $region48: #{tpu_custom_call.1} parent=5 // pred_fallthru
        _
      %p1505 = scmp.le.s32.totalorder 2, %s23
      // Predicated region
      $region69: #{tpu_custom_call.1} parent=5 // pred_check
        %p1506 = pneg %p1505
      $region70: #{tpu_custom_call.1} parent=5 // pred_check_branch
        %1508 = sbr.rel (%p1506) target = $region72
      $region71: #{tpu_custom_call.1} parent=5 // pred_region
        %s1509 = ssub.s32 %s23, 2
        // Predicated region
        $region73: #{tpu_custom_call.1} parent=71 // pred_check
          %p1510 = pneg %p234
        $region74: #{tpu_custom_call.1} parent=71 // pred_check_branch
          %1512 = sbr.rel (%p1510) target = $region76
        $region75: #{tpu_custom_call.1} parent=71 // pred_region
          %s1513 = sand.u32 %s219, 1
          %s1514 = scalar_lea.sflag [#allocation9], %s1513
          %s1515 = sand.u32 %s219, 1
          %s1516 = smul.addr %s1515, 64
          %s1517 = scalar_lea.vmem [#allocation12], %s1516
          %1518 = dma.done %s1514, 1024
        $region76: #{tpu_custom_call.1} parent=71 // pred_fallthru
          _
      $region72: #{tpu_custom_call.1} parent=5 // pred_fallthru
        _
    $region6: #{tpu_custom_call.1} parent=1 // loop_footer
      %s27 = sadd.s32 1, %s23
    $region7: #{tpu_custom_call.1} parent=1 // loop_footer_branch
      %22 = sbr.rel target = $region3
    $region8: #{tpu_custom_call.1} parent=1 // loop_exit
      _
    %1519 = vsyncpa [#allocation8], 1
    %s1520 = scalar_lea.sflag [#allocation8], 1
    %1521 = vsyncpa %s1520, 1
    %1522 = vsyncpa [#allocation11], 1
    %s1523 = scalar_lea.sflag [#allocation11], 1
    %1524 = vsyncpa %s1523, 1
    %1525 = vsyncpa [#allocation9], 1
    %s1526 = scalar_lea.sflag [#allocation9], 1
    %1527 = vsyncpa %s1526, 1

</llo_original>
